<compile_context>
chip_gen: v6e
topology: v6e:2x2x1
jax: 0.10.0
libtpu: 0.0.40
codegen_flags: <defaults>
</compile_context>

<pallas_src>
import math
import functools

import jax
import jax.numpy as jnp
from jax.experimental import pallas as pl
from jax.experimental.pallas import tpu as pltpu


_GELU_C = math.sqrt(2.0 / math.pi)
_MASK_NEG = -1e9


def _gelu_tanh(h):
    return 0.5 * h * (1.0 + jnp.tanh(_GELU_C * (h + 0.044715 * h * h * h)))


def _layernorm_in_kernel(y, gamma, beta, eps=1e-6):
    # Matches the custom PyTorch LayerNorm (std + eps, Bessel-corrected std).
    # Division replaced by an EUP reciprocal (frees VALU slots).
    n = y.shape[-1]
    mean = jnp.sum(y, axis=-1, keepdims=True) * (1.0 / n)
    d = y - mean
    var = jnp.sum(d * d, axis=-1, keepdims=True) * (1.0 / (n - 1))
    std = jnp.sqrt(var)
    return gamma * d * pl.reciprocal(std + eps, approx=True) + beta


def _layernorm_ref(y, gamma, beta, eps=1e-6):
    mean = jnp.mean(y, axis=-1, keepdims=True)
    d = y - mean
    var = jnp.sum(d * d, axis=-1, keepdims=True) / (y.shape[-1] - 1)
    return gamma * d / (jnp.sqrt(var) + eps) + beta


def transformer_block_kernel(
    x_ref, bias_ref,
    wqkv_ref, bqkv_ref, wo_ref, bo_ref,
    g1_ref, be1_ref,
    w1_ref, b1_ref, w2_ref, b2_ref,
    g2_ref, be2_ref,
    o_ref,
    *, n_heads, block_b, seq_len,
):
    x = x_ref[...].astype(jnp.float32)            # (rows, H) = (block_b*S, H)
    rows, H = x.shape
    d_k = H // n_heads
    G = n_heads * block_b

    # --- fused QKV projection: one (rows,H)x(H,3H) MXU call.  The 1/sqrt(d_k)
    # scale is already folded into the q columns of wqkv/bqkv on the host. ---
    x_bf = x.astype(jnp.bfloat16)                 # single f32->bf16 cast of x
    qkv = jnp.dot(x_bf, wqkv_ref[...],
                  preferred_element_type=jnp.float32) + bqkv_ref[...]   # (rows, 3H) f32

    # --- split heads (bf16 lane slices + stack; see header note on why the
    # heads-batched einsum / (0,2,1,3) transpose is not used). ---
    qkv_bf = qkv.astype(jnp.bfloat16).reshape(block_b, seq_len, 3 * H)

    def take_heads(base):
        return jnp.stack(
            [qkv_bf[:, :, base + h * d_k: base + (h + 1) * d_k]
             for h in range(n_heads)],
            axis=0).reshape(G, seq_len, d_k)

    qh = take_heads(0)          # (G, S, d_k) bf16, already scaled
    kh = take_heads(H)
    vh = take_heads(2 * H)

    # --- batched scaled-dot-product attention over all (head, batch) pairs ---
    scores = jnp.einsum("gqd,gkd->gqk", qh, kh,
                        preferred_element_type=jnp.float32)           # (G, S, S)
    bias = bias_ref[...].astype(jnp.float32)                          # (block_b, S, S)
    scores = (scores.reshape(n_heads, block_b, seq_len, seq_len) + bias[None, ...]
              ).reshape(G, seq_len, seq_len)
    scores = scores - jnp.max(scores, axis=-1, keepdims=True)
    e = jnp.exp(scores)
    p_attn = e * pl.reciprocal(jnp.sum(e, axis=-1, keepdims=True), approx=True)

    ctx = jnp.einsum("gqk,gkd->gqd", p_attn.astype(jnp.bfloat16), vh,
                     preferred_element_type=jnp.float32)              # (G, S, d_k)
    ctx_bf = ctx.astype(jnp.bfloat16).reshape(n_heads, block_b, seq_len, d_k)
    ctx_bf = jnp.concatenate([ctx_bf[h] for h in range(n_heads)], axis=-1)  # (block_b,S,H)
    ctx_bf = ctx_bf.reshape(rows, H)

    attn_out = jnp.dot(ctx_bf, wo_ref[...],
                       preferred_element_type=jnp.float32) + bo_ref[...]

    # --- SublayerConnection 1: LayerNorm(x + attention(x)); dropout = identity ---
    y = _layernorm_in_kernel(x + attn_out, g1_ref[...], be1_ref[...])

    # --- Position-wise feed-forward with tanh-GELU ---
    y_bf = y.astype(jnp.bfloat16)
    h1 = jnp.dot(y_bf, w1_ref[...], preferred_element_type=jnp.float32) + b1_ref[...]
    h2 = jnp.dot(_gelu_tanh(h1).astype(jnp.bfloat16), w2_ref[...],
                 preferred_element_type=jnp.float32) + b2_ref[...]

    # --- SublayerConnection 2 + final dropout (identity at inference) ---
    z = _layernorm_in_kernel(y + h2, g2_ref[...], be2_ref[...])
    o_ref[...] = z.astype(o_ref.dtype)


def _vmem_capacity_bytes():
    # Trace-time hardware query; narrow fallback only if the query itself is
    # unavailable in this environment (does NOT mask kernel compile errors).
    try:
        info = pltpu.get_tpu_info()
        cap = getattr(info, "vmem_capacity_bytes", None)
        if cap:
            return int(cap)
    except Exception:
        pass
    return 64 << 20      # conservative default (v7x per-TensorCore VMEM)


def _choose_block_b(batch, seq_len, target_rows):
    """Batch elements folded per grid step.  Prefer (a) rows % 8 == 0 without
    collapsing to a single grid step, (b) >= 2 grid steps so both TensorCores
    (v7x) / megacore halves get work, (c) the largest tile under the row
    target (amortizes per-step grid overhead)."""
    divisors = [d for d in range(1, batch + 1) if batch % d == 0]
    # Legal (rows, H) block: rows divisible by 8 or full-extent block (d == batch).
    legal = [d for d in divisors if (d * seq_len) % 8 == 0 or d == batch]
    fit = [d for d in legal if d * seq_len <= target_rows] or [min(legal)]
    multi_step = [d for d in fit if batch // d >= 2]
    return max(multi_step) if multi_step else max(fit)


def _transformer_block_impl(x, mask, params, n_heads):
    """x: (B, S, H) f32, mask: (B, S, S) (nonzero = attend)."""
    B, S, H = x.shape
    F_ = params["w1"].shape[1]
    d_k = H // n_heads
    scale = 1.0 / math.sqrt(d_k)

    # --- host-side packing (traced once under jit) ---
    wqkv = jnp.concatenate(
        [params["wq"].astype(jnp.float32) * scale,      # scale folded into q
         params["wk"].astype(jnp.float32),
         params["wv"].astype(jnp.float32)], axis=1).astype(jnp.bfloat16)   # (H, 3H)
    bqkv = jnp.concatenate(
        [params["bq"].astype(jnp.float32) * scale,
         params["bk"].astype(jnp.float32),
         params["bv"].astype(jnp.float32)], axis=1)                        # (1, 3H) f32

    x2d = x.reshape(B * S, H).astype(jnp.float32)
    # Additive mask bias shipped as bf16 (halves the only O(S^2) HBM input).
    mask_bias = jnp.where(mask == 0, jnp.float32(_MASK_NEG),
                          jnp.float32(0.0)).astype(jnp.bfloat16)

    weight_args = (wqkv, bqkv, params["wo"], params["bo"],
                   params["g1"], params["be1"],
                   params["w1"], params["b1"], params["w2"], params["b2"],
                   params["g2"], params["be2"])

    # --- generation-aware tiling / VMEM budget ---
    vmem_cap = _vmem_capacity_bytes()
    target_rows = 512 if vmem_cap >= (96 << 20) else 256
    block_b = _choose_block_b(B, S, target_rows)
    rows = block_b * S
    G = n_heads * block_b

    nbytes = lambda a: int(a.size) * a.dtype.itemsize
    param_bytes = 2 * sum(nbytes(a) for a in weight_args)            # default double-buffering
    io_bytes = 2 * (rows * H * 4 + block_b * S * S * 2 + rows * H * 4)
    attn_bytes = 3 * G * S * S * 4 + 3 * G * S * d_k * 2             # scores/e/p_attn + q/k/v heads
    dense_bytes = rows * 3 * H * (4 + 2) + 2 * rows * max(H, F_) * 4 + 3 * rows * H * 4
    needed = param_bytes + io_bytes + attn_bytes + dense_bytes + (8 << 20)
    # ~43 MiB cap on a 64 MiB v7x TensorCore; ~102 MiB on 128 MiB v5e/v6e parts.
    frac = 0.80 if vmem_cap >= (96 << 20) else 0.68
    vmem_limit = int(min(max(needed, 32 << 20), frac * vmem_cap))

    kernel = functools.partial(transformer_block_kernel,
                               n_heads=n_heads, block_b=block_b, seq_len=S)

    # Constant index_maps -> weights stay resident; pipeline does not re-fetch.
    w_specs = [pl.BlockSpec(tuple(a.shape), lambda b: (0, 0)) for a in weight_args]
    in_specs = [pl.BlockSpec((rows, H), lambda b: (b, 0)),            # x row-slab
                pl.BlockSpec((block_b, S, S), lambda b: (b, 0, 0)),   # additive mask (bf16)
                ] + w_specs

    out2d = pl.pallas_call(
        kernel,
        out_shape=jax.ShapeDtypeStruct((B * S, H), jnp.float32),
        grid_spec=pltpu.PrefetchScalarGridSpec(
            num_scalar_prefetch=0,
            grid=(B // block_b,),
            in_specs=in_specs,
            out_specs=pl.BlockSpec((rows, H), lambda b: (b, 0)),
        ),
        compiler_params=pltpu.CompilerParams(
            dimension_semantics=("parallel",),
            vmem_limit_bytes=vmem_limit,
        ),
    )(x2d, mask_bias, *weight_args)

    return out2d.reshape(B, S, H)


# Compiled once per (shapes, n_heads); no per-call retrace/sync probing.
transformer_block = jax.jit(_transformer_block_impl, static_argnums=(3,))


def ref_forward(x, mask, p, n_heads):
    """Pure-JAX reference mirroring the PyTorch module (dropout = identity)."""
    B, S, H = x.shape
    d_k = H // n_heads
    w = lambda name: p[name].astype(jnp.float32)

    q = (x @ w("wq") + p["bq"]).reshape(B, S, n_heads, d_k).transpose(0, 2, 1, 3)
    k = (x @ w("wk") + p["bk"]).reshape(B, S, n_heads, d_k).transpose(0, 2, 1, 3)
    v = (x @ w("wv") + p["bv"]).reshape(B, S, n_heads, d_k).transpose(0, 2, 1, 3)

    scores = jnp.einsum("bhqd,bhkd->bhqk", q, k) / math.sqrt(d_k)
    scores = jnp.where(mask[:, None] == 0, -1e9, scores)
    p_attn = jax.nn.softmax(scores, axis=-1)
    ctx = jnp.einsum("bhqk,bhkd->bhqd", p_attn, v)
    ctx = ctx.transpose(0, 2, 1, 3).reshape(B, S, H)
    attn_out = ctx @ w("wo") + p["bo"]

    y = _layernorm_ref(x + attn_out, p["g1"], p["be1"])

    h1 = y @ w("w1") + p["b1"]
    h2 = _gelu_tanh(h1) @ w("w2") + p["b2"]

    return _layernorm_ref(y + h2, p["g2"], p["be2"])


def make_params(key, hidden, ff):
    ks = jax.random.split(key, 8)

    def init_w(k, shape):
        # Linear weights stored pre-transposed to (in, out) and in bf16 (MXU-native
        # dtype, halves weight DMA); biases / LayerNorm params stay f32.
        return (0.02 * jax.random.normal(k, shape, dtype=jnp.float32)).astype(jnp.bfloat16)

    def init_b(k, shape):
        return (0.02 * jax.random.normal(k, shape, dtype=jnp.float32)).astype(jnp.float32)

    return {
        "wq": init_w(ks[0], (hidden, hidden)), "bq": init_b(ks[1], (1, hidden)),
        "wk": init_w(ks[2], (hidden, hidden)), "bk": init_b(ks[3], (1, hidden)),
        "wv": init_w(ks[4], (hidden, hidden)), "bv": init_b(ks[5], (1, hidden)),
        "wo": init_w(ks[6], (hidden, hidden)), "bo": init_b(ks[7], (1, hidden)),
        "g1": jnp.ones((1, hidden), jnp.float32), "be1": jnp.zeros((1, hidden), jnp.float32),
        "w1": init_w(jax.random.fold_in(key, 101), (hidden, ff)),
        "b1": init_b(jax.random.fold_in(key, 102), (1, ff)),
        "w2": init_w(jax.random.fold_in(key, 103), (ff, hidden)),
        "b2": init_b(jax.random.fold_in(key, 104), (1, hidden)),
        "g2": jnp.ones((1, hidden), jnp.float32), "be2": jnp.zeros((1, hidden), jnp.float32),
    }


if __name__ == "__main__":
    B, S, hidden, heads, ff = 2, 8, 32, 4, 64

    key = jax.random.PRNGKey(0)
    kx, kp = jax.random.split(key)
    x = jax.random.normal(kx, (B, S, hidden), dtype=jnp.float32)
    # Causal mask (nonzero = attend) exercises the masking path with no fully-masked rows.
    causal = jnp.tril(jnp.ones((S, S), dtype=jnp.float32))
    mask = jnp.broadcast_to(causal, (B, S, S))
    params = make_params(kp, hidden, ff)

    out = transformer_block(x, mask, params, heads)
    out = jax.block_until_ready(out)

    ref = ref_forward(x, mask, params, heads)
    assert out.shape == (B, S, hidden)
    assert bool(jnp.all(jnp.isfinite(out)))
    # bf16 MXU operands, host-folded q scale, approx EUP reciprocals vs. f32
    # reference -> loose tolerance.
    max_diff = float(jnp.max(jnp.abs(out - ref)))
    assert jnp.allclose(out, ref, atol=2e-2, rtol=2e-2), (
        f"mismatch vs pure-JAX reference: max abs diff = {max_diff}")

    print("KERNEL_OK")
</pallas_src>

<mosaic_0001>
module attributes {stable_mosaic.version = 11 : i64} {
  func.func @transformer_block_kernel(%arg0: i32, %arg1: memref<8x32xf32, #tpu.memory_space<vmem>>, %arg2: memref<1x8x8xbf16, #tpu.memory_space<vmem>>, %arg3: memref<32x96xbf16, #tpu.memory_space<vmem>>, %arg4: memref<1x96xf32, #tpu.memory_space<vmem>>, %arg5: memref<32x32xbf16, #tpu.memory_space<vmem>>, %arg6: memref<1x32xf32, #tpu.memory_space<vmem>>, %arg7: memref<1x32xf32, #tpu.memory_space<vmem>>, %arg8: memref<1x32xf32, #tpu.memory_space<vmem>>, %arg9: memref<32x64xbf16, #tpu.memory_space<vmem>>, %arg10: memref<1x64xf32, #tpu.memory_space<vmem>>, %arg11: memref<64x32xbf16, #tpu.memory_space<vmem>>, %arg12: memref<1x32xf32, #tpu.memory_space<vmem>>, %arg13: memref<1x32xf32, #tpu.memory_space<vmem>>, %arg14: memref<1x32xf32, #tpu.memory_space<vmem>>, %arg15: memref<8x32xf32, #tpu.memory_space<vmem>>) attributes {dimension_semantics = [#tpu.dimension_semantics<parallel>], iteration_bounds = array<i64: 2>, scalar_prefetch = 0 : i64, scratch_operands = 0 : i64, tpu.core_type = #tpu.core_type<tc>, window_params = [{transform_indices = @transform_0, window_bounds = array<i64: 8, 32>}, {transform_indices = @transform_1, window_bounds = array<i64: 1, 8, 8>}, {pipeline_mode = #tpu.pipeline_mode<synchronous>, transform_indices = @transform_2, window_bounds = array<i64: 32, 96>}, {pipeline_mode = #tpu.pipeline_mode<synchronous>, transform_indices = @transform_3, window_bounds = array<i64: 1, 96>}, {pipeline_mode = #tpu.pipeline_mode<synchronous>, transform_indices = @transform_4, window_bounds = array<i64: 32, 32>}, {pipeline_mode = #tpu.pipeline_mode<synchronous>, transform_indices = @transform_5, window_bounds = array<i64: 1, 32>}, {pipeline_mode = #tpu.pipeline_mode<synchronous>, transform_indices = @transform_6, window_bounds = array<i64: 1, 32>}, {pipeline_mode = #tpu.pipeline_mode<synchronous>, transform_indices = @transform_7, window_bounds = array<i64: 1, 32>}, {pipeline_mode = #tpu.pipeline_mode<synchronous>, transform_indices = @transform_8, window_bounds = array<i64: 32, 64>}, {pipeline_mode = #tpu.pipeline_mode<synchronous>, transform_indices = @transform_9, window_bounds = array<i64: 1, 64>}, {pipeline_mode = #tpu.pipeline_mode<synchronous>, transform_indices = @transform_10, window_bounds = array<i64: 64, 32>}, {pipeline_mode = #tpu.pipeline_mode<synchronous>, transform_indices = @transform_11, window_bounds = array<i64: 1, 32>}, {pipeline_mode = #tpu.pipeline_mode<synchronous>, transform_indices = @transform_12, window_bounds = array<i64: 1, 32>}, {pipeline_mode = #tpu.pipeline_mode<synchronous>, transform_indices = @transform_13, window_bounds = array<i64: 1, 32>}, {transform_indices = @transform_14, window_bounds = array<i64: 8, 32>}]} {
    %c0 = arith.constant 0 : index
    %c0_0 = arith.constant 0 : index
    %0 = vector.load %arg1[%c0, %c0_0] : memref<8x32xf32, #tpu.memory_space<vmem>>, vector<8x32xf32>
    %1 = arith.truncf %0 : vector<8x32xf32> to vector<8x32xbf16>
    %c0_1 = arith.constant 0 : index
    %c0_2 = arith.constant 0 : index
    %2 = vector.load %arg3[%c0_1, %c0_2] : memref<32x96xbf16, #tpu.memory_space<vmem>>, vector<32x96xbf16>
    %cst = arith.constant dense<0.000000e+00> : vector<8x96xf32>
    %3 = tpu.matmul %1, %2, %cst {dimension_numbers = #tpu.dot_dimension_numbers<[1], [0], [0], [1], [0, 0, 1, 1], [], []>} : vector<8x32xbf16>, vector<32x96xbf16>, vector<8x96xf32> -> vector<8x96xf32>
    %c0_3 = arith.constant 0 : index
    %c0_4 = arith.constant 0 : index
    %4 = vector.load %arg4[%c0_3, %c0_4] : memref<1x96xf32, #tpu.memory_space<vmem>>, vector<1x96xf32>
    %5 = vector.broadcast %4 : vector<1x96xf32> to vector<8x96xf32>
    %6 = arith.addf %3, %5 : vector<8x96xf32>
    %7 = arith.truncf %6 : vector<8x96xf32> to vector<8x96xbf16>
    %8 = vector.shape_cast %7 : vector<8x96xbf16> to vector<1x8x96xbf16>
    %9 = vector.extract_strided_slice %8 {offsets = [0, 0, 0], sizes = [1, 8, 8], strides = [1, 1, 1]} : vector<1x8x96xbf16> to vector<1x8x8xbf16>
    %10 = vector.extract_strided_slice %8 {offsets = [0, 0, 8], sizes = [1, 8, 8], strides = [1, 1, 1]} : vector<1x8x96xbf16> to vector<1x8x8xbf16>
    %11 = vector.extract_strided_slice %8 {offsets = [0, 0, 16], sizes = [1, 8, 8], strides = [1, 1, 1]} : vector<1x8x96xbf16> to vector<1x8x8xbf16>
    %12 = vector.extract_strided_slice %8 {offsets = [0, 0, 24], sizes = [1, 8, 8], strides = [1, 1, 1]} : vector<1x8x96xbf16> to vector<1x8x8xbf16>
    %13 = vector.shape_cast %9 : vector<1x8x8xbf16> to vector<1x1x8x8xbf16>
    %14 = vector.shape_cast %10 : vector<1x8x8xbf16> to vector<1x1x8x8xbf16>
    %15 = vector.shape_cast %11 : vector<1x8x8xbf16> to vector<1x1x8x8xbf16>
    %16 = vector.shape_cast %12 : vector<1x8x8xbf16> to vector<1x1x8x8xbf16>
    %17 = tpu.concatenate %13, %14, %15, %16 in 0 : vector<1x1x8x8xbf16>, vector<1x1x8x8xbf16>, vector<1x1x8x8xbf16>, vector<1x1x8x8xbf16> -> vector<4x1x8x8xbf16>
    %18 = vector.shape_cast %17 : vector<4x1x8x8xbf16> to vector<4x8x8xbf16>
    %19 = vector.extract_strided_slice %8 {offsets = [0, 0, 32], sizes = [1, 8, 8], strides = [1, 1, 1]} : vector<1x8x96xbf16> to vector<1x8x8xbf16>
    %20 = vector.extract_strided_slice %8 {offsets = [0, 0, 40], sizes = [1, 8, 8], strides = [1, 1, 1]} : vector<1x8x96xbf16> to vector<1x8x8xbf16>
    %21 = vector.extract_strided_slice %8 {offsets = [0, 0, 48], sizes = [1, 8, 8], strides = [1, 1, 1]} : vector<1x8x96xbf16> to vector<1x8x8xbf16>
    %22 = vector.extract_strided_slice %8 {offsets = [0, 0, 56], sizes = [1, 8, 8], strides = [1, 1, 1]} : vector<1x8x96xbf16> to vector<1x8x8xbf16>
    %23 = vector.shape_cast %19 : vector<1x8x8xbf16> to vector<1x1x8x8xbf16>
    %24 = vector.shape_cast %20 : vector<1x8x8xbf16> to vector<1x1x8x8xbf16>
    %25 = vector.shape_cast %21 : vector<1x8x8xbf16> to vector<1x1x8x8xbf16>
    %26 = vector.shape_cast %22 : vector<1x8x8xbf16> to vector<1x1x8x8xbf16>
    %27 = tpu.concatenate %23, %24, %25, %26 in 0 : vector<1x1x8x8xbf16>, vector<1x1x8x8xbf16>, vector<1x1x8x8xbf16>, vector<1x1x8x8xbf16> -> vector<4x1x8x8xbf16>
    %28 = vector.shape_cast %27 : vector<4x1x8x8xbf16> to vector<4x8x8xbf16>
    %29 = vector.extract_strided_slice %8 {offsets = [0, 0, 64], sizes = [1, 8, 8], strides = [1, 1, 1]} : vector<1x8x96xbf16> to vector<1x8x8xbf16>
    %30 = vector.extract_strided_slice %8 {offsets = [0, 0, 72], sizes = [1, 8, 8], strides = [1, 1, 1]} : vector<1x8x96xbf16> to vector<1x8x8xbf16>
    %31 = vector.extract_strided_slice %8 {offsets = [0, 0, 80], sizes = [1, 8, 8], strides = [1, 1, 1]} : vector<1x8x96xbf16> to vector<1x8x8xbf16>
    %32 = vector.extract_strided_slice %8 {offsets = [0, 0, 88], sizes = [1, 8, 8], strides = [1, 1, 1]} : vector<1x8x96xbf16> to vector<1x8x8xbf16>
    %33 = vector.shape_cast %29 : vector<1x8x8xbf16> to vector<1x1x8x8xbf16>
    %34 = vector.shape_cast %30 : vector<1x8x8xbf16> to vector<1x1x8x8xbf16>
    %35 = vector.shape_cast %31 : vector<1x8x8xbf16> to vector<1x1x8x8xbf16>
    %36 = vector.shape_cast %32 : vector<1x8x8xbf16> to vector<1x1x8x8xbf16>
    %37 = tpu.concatenate %33, %34, %35, %36 in 0 : vector<1x1x8x8xbf16>, vector<1x1x8x8xbf16>, vector<1x1x8x8xbf16>, vector<1x1x8x8xbf16> -> vector<4x1x8x8xbf16>
    %38 = vector.shape_cast %37 : vector<4x1x8x8xbf16> to vector<4x8x8xbf16>
    "tpu.trace_start"() <{level = 10 : i32, message = "gqd,gkd->gqk"}> : () -> ()
    %cst_5 = arith.constant dense<0.000000e+00> : vector<4x8x8xf32>
    %39 = tpu.matmul %18, %28, %cst_5 {dimension_numbers = #tpu.dot_dimension_numbers<[2], [2], [1], [1], [0, 0, 0, 1, 1, 1], [0], [0]>} : vector<4x8x8xbf16>, vector<4x8x8xbf16>, vector<4x8x8xf32> -> vector<4x8x8xf32>
    "tpu.trace_stop"() : () -> ()
    %c0_6 = arith.constant 0 : index
    %c0_7 = arith.constant 0 : index
    %c0_8 = arith.constant 0 : index
    %40 = vector.load %arg2[%c0_6, %c0_7, %c0_8] : memref<1x8x8xbf16, #tpu.memory_space<vmem>>, vector<1x8x8xbf16>
    %41 = arith.extf %40 : vector<1x8x8xbf16> to vector<1x8x8xf32>
    %42 = vector.shape_cast %39 : vector<4x8x8xf32> to vector<4x1x8x8xf32>
    %43 = vector.shape_cast %41 : vector<1x8x8xf32> to vector<1x1x8x8xf32>
    %44 = vector.broadcast %43 : vector<1x1x8x8xf32> to vector<4x1x8x8xf32>
    %45 = arith.addf %42, %44 : vector<4x1x8x8xf32>
    %46 = vector.shape_cast %45 : vector<4x1x8x8xf32> to vector<4x8x8xf32>
    %cst_9 = arith.constant dense<0xFF800000> : vector<4x8xf32>
    %47 = vector.multi_reduction <maximumf>, %46, %cst_9 [2] : vector<4x8x8xf32> to vector<4x8xf32>
    %48 = vector.shape_cast %47 : vector<4x8xf32> to vector<4x8x1xf32>
    %49 = vector.broadcast %48 : vector<4x8x1xf32> to vector<4x8x8xf32>
    %50 = arith.subf %46, %49 : vector<4x8x8xf32>
    %51 = math.exp %50 : vector<4x8x8xf32>
    %cst_10 = arith.constant dense<0.000000e+00> : vector<4x8xf32>
    %52 = vector.multi_reduction <add>, %51, %cst_10 [2] : vector<4x8x8xf32> to vector<4x8xf32>
    %53 = vector.shape_cast %52 : vector<4x8xf32> to vector<4x8x1xf32>
    %54 = tpu.reciprocal %53 {approx = true} : vector<4x8x1xf32> -> vector<4x8x1xf32>
    %55 = vector.broadcast %54 : vector<4x8x1xf32> to vector<4x8x8xf32>
    %56 = arith.mulf %51, %55 : vector<4x8x8xf32>
    %57 = arith.truncf %56 : vector<4x8x8xf32> to vector<4x8x8xbf16>
    "tpu.trace_start"() <{level = 10 : i32, message = "gqk,gkd->gqd"}> : () -> ()
    %cst_11 = arith.constant dense<0.000000e+00> : vector<4x8x8xf32>
    %58 = tpu.matmul %57, %38, %cst_11 {dimension_numbers = #tpu.dot_dimension_numbers<[2], [1], [1], [2], [0, 0, 0, 1, 1, 2], [0], [0]>} : vector<4x8x8xbf16>, vector<4x8x8xbf16>, vector<4x8x8xf32> -> vector<4x8x8xf32>
    "tpu.trace_stop"() : () -> ()
    %59 = arith.truncf %58 : vector<4x8x8xf32> to vector<4x8x8xbf16>
    %60 = vector.shape_cast %59 : vector<4x8x8xbf16> to vector<4x1x8x8xbf16>
    %61 = vector.extract_strided_slice %60 {offsets = [0, 0, 0, 0], sizes = [1, 1, 8, 8], strides = [1, 1, 1, 1]} : vector<4x1x8x8xbf16> to vector<1x1x8x8xbf16>
    %62 = vector.shape_cast %61 : vector<1x1x8x8xbf16> to vector<1x8x8xbf16>
    %63 = vector.extract_strided_slice %60 {offsets = [1, 0, 0, 0], sizes = [1, 1, 8, 8], strides = [1, 1, 1, 1]} : vector<4x1x8x8xbf16> to vector<1x1x8x8xbf16>
    %64 = vector.shape_cast %63 : vector<1x1x8x8xbf16> to vector<1x8x8xbf16>
    %65 = vector.extract_strided_slice %60 {offsets = [2, 0, 0, 0], sizes = [1, 1, 8, 8], strides = [1, 1, 1, 1]} : vector<4x1x8x8xbf16> to vector<1x1x8x8xbf16>
    %66 = vector.shape_cast %65 : vector<1x1x8x8xbf16> to vector<1x8x8xbf16>
    %67 = vector.extract_strided_slice %60 {offsets = [3, 0, 0, 0], sizes = [1, 1, 8, 8], strides = [1, 1, 1, 1]} : vector<4x1x8x8xbf16> to vector<1x1x8x8xbf16>
    %68 = vector.shape_cast %67 : vector<1x1x8x8xbf16> to vector<1x8x8xbf16>
    %69 = tpu.concatenate %62, %64, %66, %68 in 2 : vector<1x8x8xbf16>, vector<1x8x8xbf16>, vector<1x8x8xbf16>, vector<1x8x8xbf16> -> vector<1x8x32xbf16>
    %70 = vector.shape_cast %69 : vector<1x8x32xbf16> to vector<8x32xbf16>
    %c0_12 = arith.constant 0 : index
    %c0_13 = arith.constant 0 : index
    %71 = vector.load %arg5[%c0_12, %c0_13] : memref<32x32xbf16, #tpu.memory_space<vmem>>, vector<32x32xbf16>
    %cst_14 = arith.constant dense<0.000000e+00> : vector<8x32xf32>
    %72 = tpu.matmul %70, %71, %cst_14 {dimension_numbers = #tpu.dot_dimension_numbers<[1], [0], [0], [1], [0, 0, 1, 1], [], []>} : vector<8x32xbf16>, vector<32x32xbf16>, vector<8x32xf32> -> vector<8x32xf32>
    %c0_15 = arith.constant 0 : index
    %c0_16 = arith.constant 0 : index
    %73 = vector.load %arg6[%c0_15, %c0_16] : memref<1x32xf32, #tpu.memory_space<vmem>>, vector<1x32xf32>
    %74 = vector.broadcast %73 : vector<1x32xf32> to vector<8x32xf32>
    %75 = arith.addf %72, %74 : vector<8x32xf32>
    %76 = arith.addf %0, %75 : vector<8x32xf32>
    %c0_17 = arith.constant 0 : index
    %c0_18 = arith.constant 0 : index
    %77 = vector.load %arg7[%c0_17, %c0_18] : memref<1x32xf32, #tpu.memory_space<vmem>>, vector<1x32xf32>
    %c0_19 = arith.constant 0 : index
    %c0_20 = arith.constant 0 : index
    %78 = vector.load %arg8[%c0_19, %c0_20] : memref<1x32xf32, #tpu.memory_space<vmem>>, vector<1x32xf32>
    %cst_21 = arith.constant dense<0.000000e+00> : vector<8xf32>
    %79 = vector.multi_reduction <add>, %76, %cst_21 [1] : vector<8x32xf32> to vector<8xf32>
    %80 = vector.shape_cast %79 : vector<8xf32> to vector<8x1xf32>
    %cst_22 = arith.constant 3.125000e-02 : f32
    %81 = vector.broadcast %cst_22 : f32 to vector<8x1xf32>
    %82 = arith.mulf %80, %81 : vector<8x1xf32>
    %83 = vector.broadcast %82 : vector<8x1xf32> to vector<8x32xf32>
    %84 = arith.subf %76, %83 : vector<8x32xf32>
    %85 = arith.mulf %84, %84 : vector<8x32xf32>
    %cst_23 = arith.constant dense<0.000000e+00> : vector<8xf32>
    %86 = vector.multi_reduction <add>, %85, %cst_23 [1] : vector<8x32xf32> to vector<8xf32>
    %87 = vector.shape_cast %86 : vector<8xf32> to vector<8x1xf32>
    %cst_24 = arith.constant 0.0322580636 : f32
    %88 = vector.broadcast %cst_24 : f32 to vector<8x1xf32>
    %89 = arith.mulf %87, %88 : vector<8x1xf32>
    %90 = math.sqrt %89 : vector<8x1xf32>
    %91 = vector.broadcast %77 : vector<1x32xf32> to vector<8x32xf32>
    %92 = arith.mulf %91, %84 : vector<8x32xf32>
    %cst_25 = arith.constant 9.99999997E-7 : f32
    %93 = vector.broadcast %cst_25 : f32 to vector<8x1xf32>
    %94 = arith.addf %90, %93 : vector<8x1xf32>
    %95 = tpu.reciprocal %94 {approx = true} : vector<8x1xf32> -> vector<8x1xf32>
    %96 = vector.broadcast %95 : vector<8x1xf32> to vector<8x32xf32>
    %97 = arith.mulf %92, %96 : vector<8x32xf32>
    %98 = vector.broadcast %78 : vector<1x32xf32> to vector<8x32xf32>
    %99 = arith.addf %97, %98 : vector<8x32xf32>
    %100 = arith.truncf %99 : vector<8x32xf32> to vector<8x32xbf16>
    %c0_26 = arith.constant 0 : index
    %c0_27 = arith.constant 0 : index
    %101 = vector.load %arg9[%c0_26, %c0_27] : memref<32x64xbf16, #tpu.memory_space<vmem>>, vector<32x64xbf16>
    %cst_28 = arith.constant dense<0.000000e+00> : vector<8x64xf32>
    %102 = tpu.matmul %100, %101, %cst_28 {dimension_numbers = #tpu.dot_dimension_numbers<[1], [0], [0], [1], [0, 0, 1, 1], [], []>} : vector<8x32xbf16>, vector<32x64xbf16>, vector<8x64xf32> -> vector<8x64xf32>
    %c0_29 = arith.constant 0 : index
    %c0_30 = arith.constant 0 : index
    %103 = vector.load %arg10[%c0_29, %c0_30] : memref<1x64xf32, #tpu.memory_space<vmem>>, vector<1x64xf32>
    %104 = vector.broadcast %103 : vector<1x64xf32> to vector<8x64xf32>
    %105 = arith.addf %102, %104 : vector<8x64xf32>
    %cst_31 = arith.constant 5.000000e-01 : f32
    %106 = vector.broadcast %cst_31 : f32 to vector<8x64xf32>
    %107 = arith.mulf %106, %105 : vector<8x64xf32>
    %cst_32 = arith.constant 4.471500e-02 : f32
    %108 = vector.broadcast %cst_32 : f32 to vector<8x64xf32>
    %109 = arith.mulf %108, %105 : vector<8x64xf32>
    %110 = arith.mulf %109, %105 : vector<8x64xf32>
    %111 = arith.mulf %110, %105 : vector<8x64xf32>
    %112 = arith.addf %105, %111 : vector<8x64xf32>
    %cst_33 = arith.constant 0.797884583 : f32
    %113 = vector.broadcast %cst_33 : f32 to vector<8x64xf32>
    %114 = arith.mulf %113, %112 : vector<8x64xf32>
    %115 = math.tanh %114 : vector<8x64xf32>
    %cst_34 = arith.constant 1.000000e+00 : f32
    %116 = vector.broadcast %cst_34 : f32 to vector<8x64xf32>
    %117 = arith.addf %116, %115 : vector<8x64xf32>
    %118 = arith.mulf %107, %117 : vector<8x64xf32>
    %119 = arith.truncf %118 : vector<8x64xf32> to vector<8x64xbf16>
    %c0_35 = arith.constant 0 : index
    %c0_36 = arith.constant 0 : index
    %120 = vector.load %arg11[%c0_35, %c0_36] : memref<64x32xbf16, #tpu.memory_space<vmem>>, vector<64x32xbf16>
    %cst_37 = arith.constant dense<0.000000e+00> : vector<8x32xf32>
    %121 = tpu.matmul %119, %120, %cst_37 {dimension_numbers = #tpu.dot_dimension_numbers<[1], [0], [0], [1], [0, 0, 1, 1], [], []>} : vector<8x64xbf16>, vector<64x32xbf16>, vector<8x32xf32> -> vector<8x32xf32>
    %c0_38 = arith.constant 0 : index
    %c0_39 = arith.constant 0 : index
    %122 = vector.load %arg12[%c0_38, %c0_39] : memref<1x32xf32, #tpu.memory_space<vmem>>, vector<1x32xf32>
    %123 = vector.broadcast %122 : vector<1x32xf32> to vector<8x32xf32>
    %124 = arith.addf %121, %123 : vector<8x32xf32>
    %125 = arith.addf %99, %124 : vector<8x32xf32>
    %c0_40 = arith.constant 0 : index
    %c0_41 = arith.constant 0 : index
    %126 = vector.load %arg13[%c0_40, %c0_41] : memref<1x32xf32, #tpu.memory_space<vmem>>, vector<1x32xf32>
    %c0_42 = arith.constant 0 : index
    %c0_43 = arith.constant 0 : index
    %127 = vector.load %arg14[%c0_42, %c0_43] : memref<1x32xf32, #tpu.memory_space<vmem>>, vector<1x32xf32>
    %cst_44 = arith.constant dense<0.000000e+00> : vector<8xf32>
    %128 = vector.multi_reduction <add>, %125, %cst_44 [1] : vector<8x32xf32> to vector<8xf32>
    %129 = vector.shape_cast %128 : vector<8xf32> to vector<8x1xf32>
    %cst_45 = arith.constant 3.125000e-02 : f32
    %130 = vector.broadcast %cst_45 : f32 to vector<8x1xf32>
    %131 = arith.mulf %129, %130 : vector<8x1xf32>
    %132 = vector.broadcast %131 : vector<8x1xf32> to vector<8x32xf32>
    %133 = arith.subf %125, %132 : vector<8x32xf32>
    %134 = arith.mulf %133, %133 : vector<8x32xf32>
    %cst_46 = arith.constant dense<0.000000e+00> : vector<8xf32>
    %135 = vector.multi_reduction <add>, %134, %cst_46 [1] : vector<8x32xf32> to vector<8xf32>
    %136 = vector.shape_cast %135 : vector<8xf32> to vector<8x1xf32>
    %cst_47 = arith.constant 0.0322580636 : f32
    %137 = vector.broadcast %cst_47 : f32 to vector<8x1xf32>
    %138 = arith.mulf %136, %137 : vector<8x1xf32>
    %139 = math.sqrt %138 : vector<8x1xf32>
    %140 = vector.broadcast %126 : vector<1x32xf32> to vector<8x32xf32>
    %141 = arith.mulf %140, %133 : vector<8x32xf32>
    %cst_48 = arith.constant 9.99999997E-7 : f32
    %142 = vector.broadcast %cst_48 : f32 to vector<8x1xf32>
    %143 = arith.addf %139, %142 : vector<8x1xf32>
    %144 = tpu.reciprocal %143 {approx = true} : vector<8x1xf32> -> vector<8x1xf32>
    %145 = vector.broadcast %144 : vector<8x1xf32> to vector<8x32xf32>
    %146 = arith.mulf %141, %145 : vector<8x32xf32>
    %147 = vector.broadcast %127 : vector<1x32xf32> to vector<8x32xf32>
    %148 = arith.addf %146, %147 : vector<8x32xf32>
    %c0_49 = arith.constant 0 : index
    %c0_50 = arith.constant 0 : index
    %149 = vector.load %arg15[%c0_49, %c0_50] : memref<8x32xf32, #tpu.memory_space<vmem>>, vector<8x32xf32>
    tpu.vector_store %arg15[%c0_49, %c0_50], %148 {strides = array<i32>} : memref<8x32xf32, #tpu.memory_space<vmem>>, vector<8x32xf32>,
    return
  }
  func.func @transform_0(%arg0: i32) -> (i32, i32) {
    %c0_i32 = arith.constant 0 : i32
    %c0_i32_0 = arith.constant 0 : i32
    return %arg0, %c0_i32 : i32, i32
  }
  func.func @transform_1(%arg0: i32) -> (i32, i32, i32) {
    %c0_i32 = arith.constant 0 : i32
    %c0_i32_0 = arith.constant 0 : i32
    %c0_i32_1 = arith.constant 0 : i32
    return %arg0, %c0_i32, %c0_i32_0 : i32, i32, i32
  }
  func.func @transform_2(%arg0: i32) -> (i32, i32) {
    %c0_i32 = arith.constant 0 : i32
    %c0_i32_0 = arith.constant 0 : i32
    %c0_i32_1 = arith.constant 0 : i32
    return %c0_i32, %c0_i32_0 : i32, i32
  }
  func.func @transform_3(%arg0: i32) -> (i32, i32) {
    %c0_i32 = arith.constant 0 : i32
    %c0_i32_0 = arith.constant 0 : i32
    %c0_i32_1 = arith.constant 0 : i32
    return %c0_i32, %c0_i32_0 : i32, i32
  }
  func.func @transform_4(%arg0: i32) -> (i32, i32) {
    %c0_i32 = arith.constant 0 : i32
    %c0_i32_0 = arith.constant 0 : i32
    %c0_i32_1 = arith.constant 0 : i32
    return %c0_i32, %c0_i32_0 : i32, i32
  }
  func.func @transform_5(%arg0: i32) -> (i32, i32) {
    %c0_i32 = arith.constant 0 : i32
    %c0_i32_0 = arith.constant 0 : i32
    %c0_i32_1 = arith.constant 0 : i32
    return %c0_i32, %c0_i32_0 : i32, i32
  }
  func.func @transform_6(%arg0: i32) -> (i32, i32) {
    %c0_i32 = arith.constant 0 : i32
    %c0_i32_0 = arith.constant 0 : i32
    %c0_i32_1 = arith.constant 0 : i32
    return %c0_i32, %c0_i32_0 : i32, i32
  }
  func.func @transform_7(%arg0: i32) -> (i32, i32) {
    %c0_i32 = arith.constant 0 : i32
    %c0_i32_0 = arith.constant 0 : i32
    %c0_i32_1 = arith.constant 0 : i32
    return %c0_i32, %c0_i32_0 : i32, i32
  }
  func.func @transform_8(%arg0: i32) -> (i32, i32) {
    %c0_i32 = arith.constant 0 : i32
    %c0_i32_0 = arith.constant 0 : i32
    %c0_i32_1 = arith.constant 0 : i32
    return %c0_i32, %c0_i32_0 : i32, i32
  }
  func.func @transform_9(%arg0: i32) -> (i32, i32) {
    %c0_i32 = arith.constant 0 : i32
    %c0_i32_0 = arith.constant 0 : i32
    %c0_i32_1 = arith.constant 0 : i32
    return %c0_i32, %c0_i32_0 : i32, i32
  }
  func.func @transform_10(%arg0: i32) -> (i32, i32) {
    %c0_i32 = arith.constant 0 : i32
    %c0_i32_0 = arith.constant 0 : i32
    %c0_i32_1 = arith.constant 0 : i32
    return %c0_i32, %c0_i32_0 : i32, i32
  }
  func.func @transform_11(%arg0: i32) -> (i32, i32) {
    %c0_i32 = arith.constant 0 : i32
    %c0_i32_0 = arith.constant 0 : i32
    %c0_i32_1 = arith.constant 0 : i32
    return %c0_i32, %c0_i32_0 : i32, i32
  }
  func.func @transform_12(%arg0: i32) -> (i32, i32) {
    %c0_i32 = arith.constant 0 : i32
    %c0_i32_0 = arith.constant 0 : i32
    %c0_i32_1 = arith.constant 0 : i32
    return %c0_i32, %c0_i32_0 : i32, i32
  }
  func.func @transform_13(%arg0: i32) -> (i32, i32) {
    %c0_i32 = arith.constant 0 : i32
    %c0_i32_0 = arith.constant 0 : i32
    %c0_i32_1 = arith.constant 0 : i32
    return %c0_i32, %c0_i32_0 : i32, i32
  }
  func.func @transform_14(%arg0: i32) -> (i32, i32) {
    %c0_i32 = arith.constant 0 : i32
    %c0_i32_0 = arith.constant 0 : i32
    return %arg0, %c0_i32 : i32, i32
  }
}

</mosaic_0001>

<llo_original>
// kernel: _transformer_block_impl.1
$region0: #{_transformer_block_impl.1}
  #allocation0 [shape = 'u32[]', space=smem, size = 0x4, offset = 0x4, fixed_abs, tag = 'smem constant byte address 0x4 - core index']
  #allocation1 [shape = 'u32[144,128]{1,0:T(1,128)}', space=vmem, size = 0x12000, scoped, tag = 'internal scratch']
  %s0 = inlined_call_operand.vmem [shape: f32[16,32], index: 0, kind: input, shape index: {}]
  %s1 = inlined_call_operand.vmem [shape: bf16[2,8,8], index: 1, kind: input, shape index: {}]
  %s2 = inlined_call_operand.vmem [shape: bf16[32,96], index: 2, kind: input, shape index: {}]
  %s3 = inlined_call_operand.vmem [shape: f32[1,96], index: 3, kind: input, shape index: {}]
  %s4 = inlined_call_operand.vmem [shape: bf16[32,32], index: 4, kind: input, shape index: {}]
  %s5 = inlined_call_operand.vmem [shape: f32[1,32], index: 5, kind: input, shape index: {}]
  %s6 = inlined_call_operand.vmem [shape: f32[1,32], index: 6, kind: input, shape index: {}]
  %s7 = inlined_call_operand.vmem [shape: f32[1,32], index: 7, kind: input, shape index: {}]
  %s8 = inlined_call_operand.vmem [shape: bf16[32,64], index: 8, kind: input, shape index: {}]
  %s9 = inlined_call_operand.vmem [shape: f32[1,64], index: 9, kind: input, shape index: {}]
  %s10 = inlined_call_operand.vmem [shape: bf16[64,32], index: 10, kind: input, shape index: {}]
  %s11 = inlined_call_operand.vmem [shape: f32[1,32], index: 11, kind: input, shape index: {}]
  %s12 = inlined_call_operand.vmem [shape: f32[1,32], index: 12, kind: input, shape index: {}]
  %s13 = inlined_call_operand.vmem [shape: f32[1,32], index: 13, kind: input, shape index: {}]
  %s14 = inlined_call_operand.hbm [shape: f32[16,32], index: 14, kind: output, shape index: {}]
  %s15 = sld [smem:[#allocation0]]
  $region89: #{_transformer_block_impl.1} parent=0
    _
  %s17 = ssub.s32 1, %s15
  %s18 = scalar_select 0, %s17, %s15
  $region1: #{_transformer_block_impl.1} parent=0
    #allocation2 [shape = 'u8[8192]{0}', space=vmem, size = 0x2000, scoped, tag = 'output window, operand 0']
    #allocation3 [shape = 's32[2]{0}', space=sflag, size = 0x8, scoped, tag = 'scoped memory for _transformer_block_impl.1']
    %19 = vsyncpa [#allocation3], 0
    %s20 = scalar_lea.sflag [#allocation3], 1
    %21 = vsyncpa %s20, 0
    loop: start=0, step=1, limit=4
    $region2: #{_transformer_block_impl.1} parent=1 // loop_pre_header
      _
    $region3: #{_transformer_block_impl.1} parent=1 // loop_header
      %s23 = sphi 0, %s27
      %p24 = scmp.ge.s32.totalorder %s23, 4
      %s33 = sphi 0, %s35
      %s36 = sphi 0, %s33
      %s37 = sphi 0, %s36
      %s53 = sphi 0, %s37
      %s59 = sphi 0, %s61
      %s62 = sphi 0, %s59
      %s63 = sphi 0, %s62
      %s79 = sphi 0, %s63
      %s83 = sphi 0, %s83
      %s85 = sphi 0, %s83
      %s86 = sphi 0, %s85
      %s100 = sphi 0, %s86
      %s104 = sphi 0, %s104
      %s106 = sphi 0, %s104
      %s107 = sphi 0, %s106
      %s121 = sphi 0, %s107
      %s125 = sphi 0, %s125
      %s127 = sphi 0, %s125
      %s128 = sphi 0, %s127
      %s142 = sphi 0, %s128
      %s146 = sphi 0, %s146
      %s148 = sphi 0, %s146
      %s149 = sphi 0, %s148
      %s163 = sphi 0, %s149
      %s167 = sphi 0, %s167
      %s169 = sphi 0, %s167
      %s170 = sphi 0, %s169
      %s184 = sphi 0, %s170
      %s188 = sphi 0, %s188
      %s190 = sphi 0, %s188
      %s191 = sphi 0, %s190
      %s205 = sphi 0, %s191
      %s209 = sphi 0, %s209
      %s211 = sphi 0, %s209
      %s212 = sphi 0, %s211
      %s226 = sphi 0, %s212
      %s230 = sphi 0, %s230
      %s232 = sphi 0, %s230
      %s233 = sphi 0, %s232
      %s247 = sphi 0, %s233
      %s251 = sphi 0, %s251
      %s253 = sphi 0, %s251
      %s254 = sphi 0, %s253
      %s268 = sphi 0, %s254
      %s272 = sphi 0, %s272
      %s274 = sphi 0, %s272
      %s275 = sphi 0, %s274
      %s289 = sphi 0, %s275
      %s293 = sphi 0, %s293
      %s295 = sphi 0, %s293
      %s296 = sphi 0, %s295
      %s310 = sphi 0, %s296
      %s314 = sphi 0, %s314
      %s316 = sphi 0, %s314
      %s317 = sphi 0, %s316
      %s331 = sphi 0, %s317
      %s337 = sphi 0, %s339
      %s340 = sphi 0, %s337
      %s341 = sphi 0, %s340
      %s357 = sphi 0, %s341
    $region4: #{_transformer_block_impl.1} parent=1 // loop_header_branch
      %26 = sbr.rel (%p24) target = $region8
    $region5: #{_transformer_block_impl.1} parent=1 // loop_body
      %s28 = ssub.s32 %s23, 1
      %s29 = ssub.s32 %s23, 2
      %s30 = sadd.s32 %s23, 1
      %s31 = ssub.s32 %s23, %s30
      %p32 = scmp.eq.s32.totalorder %s31, 0
      %s34 = sadd.s32 %s33, 1
      %s35 = scalar_select %p32, %s33, %s34
      %p38 = pneg %p32
      %p39 = scmp.eq.s32.totalorder %s23, 1
      %p40 = por %p38, %p39
      %p41 = scmp.ne.s32.totalorder %s33, %s36
      %p42 = scmp.eq.s32.totalorder %s23, 0
      %p43 = por %p41, %p42
      %p44 = scmp.ne.s32.totalorder %s33, %s36
      %p45 = scmp.eq.s32.totalorder %s28, 1
      %p46 = por %p44, %p45
      %p47 = scmp.ne.s32.totalorder %s36, %s37
      %p48 = scmp.eq.s32.totalorder %s28, 0
      %p49 = por %p47, %p48
      %p50 = scmp.ne.s32.totalorder %s36, %s37
      %p51 = scmp.eq.s32.totalorder %s29, 1
      %p52 = por %p50, %p51
      %p54 = scmp.ne.s32.totalorder %s37, %s53
      %p55 = scmp.eq.s32.totalorder %s29, 0
      %p56 = por %p54, %p55
      %s57 = ssub.s32 %s23, %s30
      %p58 = scmp.eq.s32.totalorder %s57, 0
      %s60 = sadd.s32 %s59, 1
      %s61 = scalar_select %p58, %s59, %s60
      %p64 = pneg %p58
      %p65 = scmp.eq.s32.totalorder %s23, 1
      %p66 = por %p64, %p65
      %p67 = scmp.ne.s32.totalorder %s59, %s62
      %p68 = scmp.eq.s32.totalorder %s23, 0
      %p69 = por %p67, %p68
      %p70 = scmp.ne.s32.totalorder %s59, %s62
      %p71 = scmp.eq.s32.totalorder %s28, 1
      %p72 = por %p70, %p71
      %p73 = scmp.ne.s32.totalorder %s62, %s63
      %p74 = scmp.eq.s32.totalorder %s28, 0
      %p75 = por %p73, %p74
      %p76 = scmp.ne.s32.totalorder %s62, %s63
      %p77 = scmp.eq.s32.totalorder %s29, 1
      %p78 = por %p76, %p77
      %p80 = scmp.ne.s32.totalorder %s63, %s79
      %p81 = scmp.eq.s32.totalorder %s29, 0
      %p82 = por %p80, %p81
      %s84 = sadd.s32 %s83, 1
      %p87 = scmp.eq.s32.totalorder %s23, 1
      %p88 = scmp.ne.s32.totalorder %s83, %s85
      %p89 = scmp.eq.s32.totalorder %s23, 0
      %p90 = por %p88, %p89
      %p91 = scmp.ne.s32.totalorder %s83, %s85
      %p92 = scmp.eq.s32.totalorder %s28, 1
      %p93 = por %p91, %p92
      %p94 = scmp.ne.s32.totalorder %s85, %s86
      %p95 = scmp.eq.s32.totalorder %s28, 0
      %p96 = por %p94, %p95
      %p97 = scmp.ne.s32.totalorder %s85, %s86
      %p98 = scmp.eq.s32.totalorder %s29, 1
      %p99 = por %p97, %p98
      %p101 = scmp.ne.s32.totalorder %s86, %s100
      %p102 = scmp.eq.s32.totalorder %s29, 0
      %p103 = por %p101, %p102
      %s105 = sadd.s32 %s104, 1
      %p108 = scmp.eq.s32.totalorder %s23, 1
      %p109 = scmp.ne.s32.totalorder %s104, %s106
      %p110 = scmp.eq.s32.totalorder %s23, 0
      %p111 = por %p109, %p110
      %p112 = scmp.ne.s32.totalorder %s104, %s106
      %p113 = scmp.eq.s32.totalorder %s28, 1
      %p114 = por %p112, %p113
      %p115 = scmp.ne.s32.totalorder %s106, %s107
      %p116 = scmp.eq.s32.totalorder %s28, 0
      %p117 = por %p115, %p116
      %p118 = scmp.ne.s32.totalorder %s106, %s107
      %p119 = scmp.eq.s32.totalorder %s29, 1
      %p120 = por %p118, %p119
      %p122 = scmp.ne.s32.totalorder %s107, %s121
      %p123 = scmp.eq.s32.totalorder %s29, 0
      %p124 = por %p122, %p123
      %s126 = sadd.s32 %s125, 1
      %p129 = scmp.eq.s32.totalorder %s23, 1
      %p130 = scmp.ne.s32.totalorder %s125, %s127
      %p131 = scmp.eq.s32.totalorder %s23, 0
      %p132 = por %p130, %p131
      %p133 = scmp.ne.s32.totalorder %s125, %s127
      %p134 = scmp.eq.s32.totalorder %s28, 1
      %p135 = por %p133, %p134
      %p136 = scmp.ne.s32.totalorder %s127, %s128
      %p137 = scmp.eq.s32.totalorder %s28, 0
      %p138 = por %p136, %p137
      %p139 = scmp.ne.s32.totalorder %s127, %s128
      %p140 = scmp.eq.s32.totalorder %s29, 1
      %p141 = por %p139, %p140
      %p143 = scmp.ne.s32.totalorder %s128, %s142
      %p144 = scmp.eq.s32.totalorder %s29, 0
      %p145 = por %p143, %p144
      %s147 = sadd.s32 %s146, 1
      %p150 = scmp.eq.s32.totalorder %s23, 1
      %p151 = scmp.ne.s32.totalorder %s146, %s148
      %p152 = scmp.eq.s32.totalorder %s23, 0
      %p153 = por %p151, %p152
      %p154 = scmp.ne.s32.totalorder %s146, %s148
      %p155 = scmp.eq.s32.totalorder %s28, 1
      %p156 = por %p154, %p155
      %p157 = scmp.ne.s32.totalorder %s148, %s149
      %p158 = scmp.eq.s32.totalorder %s28, 0
      %p159 = por %p157, %p158
      %p160 = scmp.ne.s32.totalorder %s148, %s149
      %p161 = scmp.eq.s32.totalorder %s29, 1
      %p162 = por %p160, %p161
      %p164 = scmp.ne.s32.totalorder %s149, %s163
      %p165 = scmp.eq.s32.totalorder %s29, 0
      %p166 = por %p164, %p165
      %s168 = sadd.s32 %s167, 1
      %p171 = scmp.eq.s32.totalorder %s23, 1
      %p172 = scmp.ne.s32.totalorder %s167, %s169
      %p173 = scmp.eq.s32.totalorder %s23, 0
      %p174 = por %p172, %p173
      %p175 = scmp.ne.s32.totalorder %s167, %s169
      %p176 = scmp.eq.s32.totalorder %s28, 1
      %p177 = por %p175, %p176
      %p178 = scmp.ne.s32.totalorder %s169, %s170
      %p179 = scmp.eq.s32.totalorder %s28, 0
      %p180 = por %p178, %p179
      %p181 = scmp.ne.s32.totalorder %s169, %s170
      %p182 = scmp.eq.s32.totalorder %s29, 1
      %p183 = por %p181, %p182
      %p185 = scmp.ne.s32.totalorder %s170, %s184
      %p186 = scmp.eq.s32.totalorder %s29, 0
      %p187 = por %p185, %p186
      %s189 = sadd.s32 %s188, 1
      %p192 = scmp.eq.s32.totalorder %s23, 1
      %p193 = scmp.ne.s32.totalorder %s188, %s190
      %p194 = scmp.eq.s32.totalorder %s23, 0
      %p195 = por %p193, %p194
      %p196 = scmp.ne.s32.totalorder %s188, %s190
      %p197 = scmp.eq.s32.totalorder %s28, 1
      %p198 = por %p196, %p197
      %p199 = scmp.ne.s32.totalorder %s190, %s191
      %p200 = scmp.eq.s32.totalorder %s28, 0
      %p201 = por %p199, %p200
      %p202 = scmp.ne.s32.totalorder %s190, %s191
      %p203 = scmp.eq.s32.totalorder %s29, 1
      %p204 = por %p202, %p203
      %p206 = scmp.ne.s32.totalorder %s191, %s205
      %p207 = scmp.eq.s32.totalorder %s29, 0
      %p208 = por %p206, %p207
      %s210 = sadd.s32 %s209, 1
      %p213 = scmp.eq.s32.totalorder %s23, 1
      %p214 = scmp.ne.s32.totalorder %s209, %s211
      %p215 = scmp.eq.s32.totalorder %s23, 0
      %p216 = por %p214, %p215
      %p217 = scmp.ne.s32.totalorder %s209, %s211
      %p218 = scmp.eq.s32.totalorder %s28, 1
      %p219 = por %p217, %p218
      %p220 = scmp.ne.s32.totalorder %s211, %s212
      %p221 = scmp.eq.s32.totalorder %s28, 0
      %p222 = por %p220, %p221
      %p223 = scmp.ne.s32.totalorder %s211, %s212
      %p224 = scmp.eq.s32.totalorder %s29, 1
      %p225 = por %p223, %p224
      %p227 = scmp.ne.s32.totalorder %s212, %s226
      %p228 = scmp.eq.s32.totalorder %s29, 0
      %p229 = por %p227, %p228
      %s231 = sadd.s32 %s230, 1
      %p234 = scmp.eq.s32.totalorder %s23, 1
      %p235 = scmp.ne.s32.totalorder %s230, %s232
      %p236 = scmp.eq.s32.totalorder %s23, 0
      %p237 = por %p235, %p236
      %p238 = scmp.ne.s32.totalorder %s230, %s232
      %p239 = scmp.eq.s32.totalorder %s28, 1
      %p240 = por %p238, %p239
      %p241 = scmp.ne.s32.totalorder %s232, %s233
      %p242 = scmp.eq.s32.totalorder %s28, 0
      %p243 = por %p241, %p242
      %p244 = scmp.ne.s32.totalorder %s232, %s233
      %p245 = scmp.eq.s32.totalorder %s29, 1
      %p246 = por %p244, %p245
      %p248 = scmp.ne.s32.totalorder %s233, %s247
      %p249 = scmp.eq.s32.totalorder %s29, 0
      %p250 = por %p248, %p249
      %s252 = sadd.s32 %s251, 1
      %p255 = scmp.eq.s32.totalorder %s23, 1
      %p256 = scmp.ne.s32.totalorder %s251, %s253
      %p257 = scmp.eq.s32.totalorder %s23, 0
      %p258 = por %p256, %p257
      %p259 = scmp.ne.s32.totalorder %s251, %s253
      %p260 = scmp.eq.s32.totalorder %s28, 1
      %p261 = por %p259, %p260
      %p262 = scmp.ne.s32.totalorder %s253, %s254
      %p263 = scmp.eq.s32.totalorder %s28, 0
      %p264 = por %p262, %p263
      %p265 = scmp.ne.s32.totalorder %s253, %s254
      %p266 = scmp.eq.s32.totalorder %s29, 1
      %p267 = por %p265, %p266
      %p269 = scmp.ne.s32.totalorder %s254, %s268
      %p270 = scmp.eq.s32.totalorder %s29, 0
      %p271 = por %p269, %p270
      %s273 = sadd.s32 %s272, 1
      %p276 = scmp.eq.s32.totalorder %s23, 1
      %p277 = scmp.ne.s32.totalorder %s272, %s274
      %p278 = scmp.eq.s32.totalorder %s23, 0
      %p279 = por %p277, %p278
      %p280 = scmp.ne.s32.totalorder %s272, %s274
      %p281 = scmp.eq.s32.totalorder %s28, 1
      %p282 = por %p280, %p281
      %p283 = scmp.ne.s32.totalorder %s274, %s275
      %p284 = scmp.eq.s32.totalorder %s28, 0
      %p285 = por %p283, %p284
      %p286 = scmp.ne.s32.totalorder %s274, %s275
      %p287 = scmp.eq.s32.totalorder %s29, 1
      %p288 = por %p286, %p287
      %p290 = scmp.ne.s32.totalorder %s275, %s289
      %p291 = scmp.eq.s32.totalorder %s29, 0
      %p292 = por %p290, %p291
      %s294 = sadd.s32 %s293, 1
      %p297 = scmp.eq.s32.totalorder %s23, 1
      %p298 = scmp.ne.s32.totalorder %s293, %s295
      %p299 = scmp.eq.s32.totalorder %s23, 0
      %p300 = por %p298, %p299
      %p301 = scmp.ne.s32.totalorder %s293, %s295
      %p302 = scmp.eq.s32.totalorder %s28, 1
      %p303 = por %p301, %p302
      %p304 = scmp.ne.s32.totalorder %s295, %s296
      %p305 = scmp.eq.s32.totalorder %s28, 0
      %p306 = por %p304, %p305
      %p307 = scmp.ne.s32.totalorder %s295, %s296
      %p308 = scmp.eq.s32.totalorder %s29, 1
      %p309 = por %p307, %p308
      %p311 = scmp.ne.s32.totalorder %s296, %s310
      %p312 = scmp.eq.s32.totalorder %s29, 0
      %p313 = por %p311, %p312
      %s315 = sadd.s32 %s314, 1
      %p318 = scmp.eq.s32.totalorder %s23, 1
      %p319 = scmp.ne.s32.totalorder %s314, %s316
      %p320 = scmp.eq.s32.totalorder %s23, 0
      %p321 = por %p319, %p320
      %p322 = scmp.ne.s32.totalorder %s314, %s316
      %p323 = scmp.eq.s32.totalorder %s28, 1
      %p324 = por %p322, %p323
      %p325 = scmp.ne.s32.totalorder %s316, %s317
      %p326 = scmp.eq.s32.totalorder %s28, 0
      %p327 = por %p325, %p326
      %p328 = scmp.ne.s32.totalorder %s316, %s317
      %p329 = scmp.eq.s32.totalorder %s29, 1
      %p330 = por %p328, %p329
      %p332 = scmp.ne.s32.totalorder %s317, %s331
      %p333 = scmp.eq.s32.totalorder %s29, 0
      %p334 = por %p332, %p333
      %s335 = ssub.s32 %s23, %s30
      %p336 = scmp.eq.s32.totalorder %s335, 0
      %s338 = sadd.s32 %s337, 1
      %s339 = scalar_select %p336, %s337, %s338
      %p342 = pneg %p336
      %p343 = scmp.eq.s32.totalorder %s23, 1
      %p344 = por %p342, %p343
      %p345 = scmp.ne.s32.totalorder %s337, %s340
      %p346 = scmp.eq.s32.totalorder %s23, 0
      %p347 = por %p345, %p346
      %p348 = scmp.ne.s32.totalorder %s337, %s340
      %p349 = scmp.eq.s32.totalorder %s28, 1
      %p350 = por %p348, %p349
      %p351 = scmp.ne.s32.totalorder %s340, %s341
      %p352 = scmp.eq.s32.totalorder %s28, 0
      %p353 = por %p351, %p352
      %p354 = scmp.ne.s32.totalorder %s340, %s341
      %p355 = scmp.eq.s32.totalorder %s29, 1
      %p356 = por %p354, %p355
      %p358 = scmp.ne.s32.totalorder %s341, %s357
      %p359 = scmp.eq.s32.totalorder %s29, 0
      %p360 = por %p358, %p359
      %p361 = scmp.le.s32.totalorder 1, %s23
      %p362 = scmp.lt.s32.totalorder %s23, 3
      %p363 = pnand %p361, %p362
      %p364 = pneg %p363
      // Predicated region
      $region9: #{_transformer_block_impl.1} parent=5 // pred_check
        _
      $region10: #{_transformer_block_impl.1} parent=5 // pred_check_branch
        %366 = sbr.rel (%p363) target = $region12
      $region11: #{_transformer_block_impl.1} parent=5 // pred_region
        %s367 = ssub.s32 %s23, 1
        // Predicated region
        $region13: #{_transformer_block_impl.1} parent=11 // pred_check
          %p368 = pneg %p96
        $region14: #{_transformer_block_impl.1} parent=11 // pred_check_branch
          %370 = sbr.rel (%p368) target = $region16
        $region15: #{_transformer_block_impl.1} parent=11 // pred_region
          _
        $region16: #{_transformer_block_impl.1} parent=11 // pred_fallthru
          _
        // Predicated region
        $region17: #{_transformer_block_impl.1} parent=11 // pred_check
          %p371 = pneg %p117
        $region18: #{_transformer_block_impl.1} parent=11 // pred_check_branch
          %373 = sbr.rel (%p371) target = $region20
        $region19: #{_transformer_block_impl.1} parent=11 // pred_region
          _
        $region20: #{_transformer_block_impl.1} parent=11 // pred_fallthru
          _
        // Predicated region
        $region21: #{_transformer_block_impl.1} parent=11 // pred_check
          %p374 = pneg %p138
        $region22: #{_transformer_block_impl.1} parent=11 // pred_check_branch
          %376 = sbr.rel (%p374) target = $region24
        $region23: #{_transformer_block_impl.1} parent=11 // pred_region
          _
        $region24: #{_transformer_block_impl.1} parent=11 // pred_fallthru
          _
        // Predicated region
        $region25: #{_transformer_block_impl.1} parent=11 // pred_check
          %p377 = pneg %p159
        $region26: #{_transformer_block_impl.1} parent=11 // pred_check_branch
          %379 = sbr.rel (%p377) target = $region28
        $region27: #{_transformer_block_impl.1} parent=11 // pred_region
          _
        $region28: #{_transformer_block_impl.1} parent=11 // pred_fallthru
          _
        // Predicated region
        $region29: #{_transformer_block_impl.1} parent=11 // pred_check
          %p380 = pneg %p180
        $region30: #{_transformer_block_impl.1} parent=11 // pred_check_branch
          %382 = sbr.rel (%p380) target = $region32
        $region31: #{_transformer_block_impl.1} parent=11 // pred_region
          _
        $region32: #{_transformer_block_impl.1} parent=11 // pred_fallthru
          _
        // Predicated region
        $region33: #{_transformer_block_impl.1} parent=11 // pred_check
          %p383 = pneg %p201
        $region34: #{_transformer_block_impl.1} parent=11 // pred_check_branch
          %385 = sbr.rel (%p383) target = $region36
        $region35: #{_transformer_block_impl.1} parent=11 // pred_region
          _
        $region36: #{_transformer_block_impl.1} parent=11 // pred_fallthru
          _
        // Predicated region
        $region37: #{_transformer_block_impl.1} parent=11 // pred_check
          %p386 = pneg %p222
        $region38: #{_transformer_block_impl.1} parent=11 // pred_check_branch
          %388 = sbr.rel (%p386) target = $region40
        $region39: #{_transformer_block_impl.1} parent=11 // pred_region
          _
        $region40: #{_transformer_block_impl.1} parent=11 // pred_fallthru
          _
        // Predicated region
        $region41: #{_transformer_block_impl.1} parent=11 // pred_check
          %p389 = pneg %p243
        $region42: #{_transformer_block_impl.1} parent=11 // pred_check_branch
          %391 = sbr.rel (%p389) target = $region44
        $region43: #{_transformer_block_impl.1} parent=11 // pred_region
          _
        $region44: #{_transformer_block_impl.1} parent=11 // pred_fallthru
          _
        // Predicated region
        $region45: #{_transformer_block_impl.1} parent=11 // pred_check
          %p392 = pneg %p264
        $region46: #{_transformer_block_impl.1} parent=11 // pred_check_branch
          %394 = sbr.rel (%p392) target = $region48
        $region47: #{_transformer_block_impl.1} parent=11 // pred_region
          _
        $region48: #{_transformer_block_impl.1} parent=11 // pred_fallthru
          _
        // Predicated region
        $region49: #{_transformer_block_impl.1} parent=11 // pred_check
          %p395 = pneg %p285
        $region50: #{_transformer_block_impl.1} parent=11 // pred_check_branch
          %397 = sbr.rel (%p395) target = $region52
        $region51: #{_transformer_block_impl.1} parent=11 // pred_region
          _
        $region52: #{_transformer_block_impl.1} parent=11 // pred_fallthru
          _
        // Predicated region
        $region53: #{_transformer_block_impl.1} parent=11 // pred_check
          %p398 = pneg %p306
        $region54: #{_transformer_block_impl.1} parent=11 // pred_check_branch
          %400 = sbr.rel (%p398) target = $region56
        $region55: #{_transformer_block_impl.1} parent=11 // pred_region
          _
        $region56: #{_transformer_block_impl.1} parent=11 // pred_fallthru
          _
        // Predicated region
        $region57: #{_transformer_block_impl.1} parent=11 // pred_check
          %p401 = pneg %p327
        $region58: #{_transformer_block_impl.1} parent=11 // pred_check_branch
          %403 = sbr.rel (%p401) target = $region60
        $region59: #{_transformer_block_impl.1} parent=11 // pred_region
          _
        $region60: #{_transformer_block_impl.1} parent=11 // pred_fallthru
          _
      $region12: #{_transformer_block_impl.1} parent=5 // pred_fallthru
        _
      %p404 = scmp.lt.s32.totalorder %s23, 2
      // Predicated region
      $region61: #{_transformer_block_impl.1} parent=5 // pred_check
        %p405 = pneg %p404
      $region62: #{_transformer_block_impl.1} parent=5 // pred_check_branch
        %407 = sbr.rel (%p405) target = $region64
      $region63: #{_transformer_block_impl.1} parent=5 // pred_region
        // Predicated region
        $region65: #{_transformer_block_impl.1} parent=63 // pred_check
          %p408 = pneg %p43
        $region66: #{_transformer_block_impl.1} parent=63 // pred_check_branch
          %410 = sbr.rel (%p408) target = $region68
        $region67: #{_transformer_block_impl.1} parent=63 // pred_region
          %p411 = scmp.lt.s32.totalorder %s23, 1
          %s412 = scalar_select %p411, %s23, 1
          %s413 = smul.addr %s412, 8
          %s414 = scalar_lea.vmem %s0, %s413
        $region68: #{_transformer_block_impl.1} parent=63 // pred_fallthru
          _
        // Predicated region
        $region69: #{_transformer_block_impl.1} parent=63 // pred_check
          %p415 = pneg %p69
        $region70: #{_transformer_block_impl.1} parent=63 // pred_check_branch
          %417 = sbr.rel (%p415) target = $region72
        $region71: #{_transformer_block_impl.1} parent=63 // pred_region
          %p418 = scmp.lt.s32.totalorder %s23, 1
          %s419 = scalar_select %p418, %s23, 1
          %s420 = smul.addr %s419, 4
          %s421 = scalar_lea.vmem %s1, %s420
        $region72: #{_transformer_block_impl.1} parent=63 // pred_fallthru
          _
      $region64: #{_transformer_block_impl.1} parent=5 // pred_fallthru
        _
      %p422 = scmp.le.s32.totalorder 1, %s23
      %p423 = scmp.lt.s32.totalorder %s23, 3
      %p424 = pnand %p422, %p423
      %p425 = pneg %p424
      // Predicated region
      $region73: #{_transformer_block_impl.1} parent=5 // pred_check
        _
      $region74: #{_transformer_block_impl.1} parent=5 // pred_check_branch
        %427 = sbr.rel (%p424) target = $region76
      $region75: #{_transformer_block_impl.1} parent=5 // pred_region
        %s428 = ssub.s32 %s23, 1
        %p429 = scmp.lt.s32.totalorder %s28, 1
        %s430 = scalar_select %p429, %s28, 1
        %s431 = smul.addr %s430, 8
        %s432 = scalar_lea.vmem %s0, %s431
        %p433 = pneg %p49
        %p434 = pneg %p46
        %p435 = scmp.lt.s32.totalorder %s28, 1
        %s436 = scalar_select %p435, %s28, 1
        %s437 = smul.addr %s436, 4
        %s438 = scalar_lea.vmem %s1, %s437
        %p439 = pneg %p75
        %p440 = pneg %p72
        %p441 = pneg %p96
        %p442 = pneg %p93
        %p443 = pneg %p117
        %p444 = pneg %p114
        %p445 = pneg %p138
        %p446 = pneg %p135
        %p447 = pneg %p159
        %p448 = pneg %p156
        %p449 = pneg %p180
        %p450 = pneg %p177
        %p451 = pneg %p201
        %p452 = pneg %p198
        %p453 = pneg %p222
        %p454 = pneg %p219
        %p455 = pneg %p243
        %p456 = pneg %p240
        %p457 = pneg %p264
        %p458 = pneg %p261
        %p459 = pneg %p285
        %p460 = pneg %p282
        %p461 = pneg %p306
        %p462 = pneg %p303
        %p463 = pneg %p327
        %p464 = pneg %p324
        %p465 = pneg %p353
        %p466 = pneg %p350
        %s467 = sand.u32 %s340, 1
        %s468 = scalar_lea.sflag [#allocation3], %s467
        %s469 = sand.u32 %s340, 1
        %s470 = smul.addr %s469, 8
        %s471 = scalar_lea.vmem [#allocation2], %s470
        %p472 = scmp.lt.s32.totalorder %s28, 1
        %s473 = scalar_select %p472, %s28, 1
        %s474 = smul.addr %s473, 8
        %s475 = scalar_lea.vmem %s0, %s474
        %p476 = scmp.lt.s32.totalorder %s28, 1
        %s477 = scalar_select %p476, %s28, 1
        %s478 = smul.addr %s477, 4
        %s479 = scalar_lea.vmem %s1, %s478
        %v481 = vld [vmem:[%s475] sm:$0xff]
        %v482 = vpack.c.bf16 %v481, %v481
        %v483 = vld [vmem:[%s2] sm:$0xf]
        %v484 = vld [vmem:[%s2 + $0x4] sm:$0xf]
        %v485 = vld [vmem:[%s2 + $0x8] sm:$0xf]
        %v486 = vld [vmem:[%s2 + $0xc] sm:$0xf]
        %v487 = vld [vmem:[%s3] sm:$0x1]
        %v489 = vlaneseq
        %v490 = vshrl.u32 %v489, 7
        %v491 = vsub.s32 0, %v490
        %v492 = vrot.slane %v487, %v491
        %v498 = vunpack.c.l.b16 %v483
        %v499 = vunpack.c.l.b16 %v484
        %v500 = vunpack.c.l.b16 %v485
        %v501 = vunpack.c.l.b16 %v486
        %v502 = vpack.c.b16 %v499, %v498
        %v503 = vpack.c.b16 %v501, %v500
        %vm506 = vcmask 261120
        %v508 = vsel %vm506, %v482, 0
        %510 = vmatprep.subr.bf16.mxu0 0
        %511 = vmatpush1.bf16.msra.mxu0 0
        %512 = vmatprep.subr.bf16.mxu0 0
        %513 = vmatpush1.bf16.msra.mxu0 0
        %514 = vmatprep.subr.bf16.mxu0 0
        %515 = vmatpush1.bf16.msra.mxu0 0
        %516 = vmatprep.subr.bf16.mxu0 0
        %517 = vmatpush1.bf16.msra.mxu0 0
        %518 = vmatprep.subr.bf16.mxu0 0
        %519 = vmatpush1.bf16.msra.mxu0 0
        %520 = vmatprep.subr.bf16.mxu0 0
        %521 = vmatpush1.bf16.msra.mxu0 0
        %522 = vmatprep.subr.bf16.mxu0 0
        %523 = vmatpush1.bf16.msra.mxu0 %v503
        %524 = vmatprep.subr.bf16.mxu0 0
        %525 = vmatpush1.bf16.msra.mxu0 %v502
        %526 = vmatprep.subr.bf16.mxu0 0
        %527 = vmatpush2.bf16.msra.mxu0 0
        %528 = vmatprep.subr.bf16.mxu0 0
        %529 = vmatpush2.bf16.msra.mxu0 0
        %530 = vmatprep.subr.bf16.mxu0 0
        %531 = vmatpush2.bf16.msra.mxu0 0
        %532 = vmatprep.subr.bf16.mxu0 0
        %533 = vmatpush2.bf16.msra.mxu0 0
        %534 = vmatprep.subr.bf16.mxu0 0
        %535 = vmatpush2.bf16.msra.mxu0 0
        %536 = vmatprep.subr.bf16.mxu0 0
        %537 = vmatpush2.bf16.msra.mxu0 0
        %538 = vmatprep.subr.bf16.mxu0 0
        %539 = vmatpush2.bf16.msra.mxu0 0
        %540 = vmatprep.subr.bf16.mxu0 0
        %541 = vmatpush2.bf16.msra.mxu0 0
        %542 = vmatprep.mubr.bf16.mxu0 0
        %543 = vmatmul.mubr.bf16.gmra.mxu0 %v508
        %v544 = vpop.f32.mrf.mxu0
        %v545 = vadd.f32 %v492, %v544
        %v546 = vpop.f32.mrf.mxu0
        %v547 = vpop.f32.mrf.mxu0
        %v548 = vpop.f32.mrf.mxu0
        %549 = vdwg.mxu0
        %v550 = vpack.c.bf16 %v545, %v545
        %552 = vrot.lane.b32.xlu0 %v550, 120
        %v553 = vpop.permute.xlu0 %552
        %554 = vrot.lane.b32.xlu0 %v550, 112
        %v555 = vpop.permute.xlu0 %554
        %556 = vrot.lane.b32.xlu0 %v550, 104
        %v557 = vpop.permute.xlu0 %556
        %558 = vrot.lane.b32.xlu0 %v550, 96
        %v559 = vpop.permute.xlu0 %558
        %vm560 = vcmask 64512
        %v562 = vsel %vm560, %v550, 0
        %v565 = vsel %vm560, %v559, 0
        %567 = vmatprep.subr.bf16.mxu0 0
        %568 = vmatpush1.bf16.xpose.msra.mxu0 0
        %569 = vmatprep.subr.bf16.mxu0 0
        %570 = vmatpush1.bf16.xpose.msra.mxu0 0
        %571 = vmatprep.subr.bf16.mxu0 0
        %572 = vmatpush1.bf16.xpose.msra.mxu0 0
        %573 = vmatprep.subr.bf16.mxu0 0
        %574 = vmatpush1.bf16.xpose.msra.mxu0 0
        %575 = vmatprep.subr.bf16.mxu0 0
        %576 = vmatpush1.bf16.xpose.msra.mxu0 0
        %577 = vmatprep.subr.bf16.mxu0 0
        %578 = vmatpush1.bf16.xpose.msra.mxu0 0
        %579 = vmatprep.subr.bf16.mxu0 0
        %580 = vmatpush1.bf16.xpose.msra.mxu0 0
        %581 = vmatprep.subr.bf16.mxu0 0
        %582 = vmatpush1.bf16.xpose.msra.mxu0 %v565
        %583 = vmatprep.subr.bf16.mxu0 0
        %584 = vmatpush2.bf16.xpose.msra.mxu0 0
        %585 = vmatprep.subr.bf16.mxu0 0
        %586 = vmatpush2.bf16.xpose.msra.mxu0 0
        %587 = vmatprep.subr.bf16.mxu0 0
        %588 = vmatpush2.bf16.xpose.msra.mxu0 0
        %589 = vmatprep.subr.bf16.mxu0 0
        %590 = vmatpush2.bf16.xpose.msra.mxu0 0
        %591 = vmatprep.subr.bf16.mxu0 0
        %592 = vmatpush2.bf16.xpose.msra.mxu0 0
        %593 = vmatprep.subr.bf16.mxu0 0
        %594 = vmatpush2.bf16.xpose.msra.mxu0 0
        %595 = vmatprep.subr.bf16.mxu0 0
        %596 = vmatpush2.bf16.xpose.msra.mxu0 0
        %597 = vmatprep.subr.bf16.mxu0 0
        %598 = vmatpush2.bf16.xpose.msra.mxu0 0
        %599 = vmatprep.mubr.bf16.mxu0 0
        %600 = vmatmul.mubr.bf16.gmra.mxu0 %v562
        %v601 = vpop.f32.mrf.mxu0
        %v602 = vadd.f32 0.0, %v601
        %v603 = vpop.f32.mrf.mxu0
        %v604 = vpop.f32.mrf.mxu0
        %v605 = vpop.f32.mrf.mxu0
        %606 = vdwg.mxu0
        %607 = vrot.lane.b32.xlu0 %v553, 96
        %v608 = vpop.permute.xlu0 %607
        %v610 = vsel %vm560, %v553, 0
        %v613 = vsel %vm560, %v608, 0
        %615 = vmatprep.subr.bf16.mxu0 0
        %616 = vmatpush1.bf16.xpose.msra.mxu0 0
        %617 = vmatprep.subr.bf16.mxu0 0
        %618 = vmatpush1.bf16.xpose.msra.mxu0 0
        %619 = vmatprep.subr.bf16.mxu0 0
        %620 = vmatpush1.bf16.xpose.msra.mxu0 0
        %621 = vmatprep.subr.bf16.mxu0 0
        %622 = vmatpush1.bf16.xpose.msra.mxu0 0
        %623 = vmatprep.subr.bf16.mxu0 0
        %624 = vmatpush1.bf16.xpose.msra.mxu0 0
        %625 = vmatprep.subr.bf16.mxu0 0
        %626 = vmatpush1.bf16.xpose.msra.mxu0 0
        %627 = vmatprep.subr.bf16.mxu0 0
        %628 = vmatpush1.bf16.xpose.msra.mxu0 0
        %629 = vmatprep.subr.bf16.mxu0 0
        %630 = vmatpush1.bf16.xpose.msra.mxu0 %v613
        %631 = vmatprep.subr.bf16.mxu0 0
        %632 = vmatpush2.bf16.xpose.msra.mxu0 0
        %633 = vmatprep.subr.bf16.mxu0 0
        %634 = vmatpush2.bf16.xpose.msra.mxu0 0
        %635 = vmatprep.subr.bf16.mxu0 0
        %636 = vmatpush2.bf16.xpose.msra.mxu0 0
        %637 = vmatprep.subr.bf16.mxu0 0
        %638 = vmatpush2.bf16.xpose.msra.mxu0 0
        %639 = vmatprep.subr.bf16.mxu0 0
        %640 = vmatpush2.bf16.xpose.msra.mxu0 0
        %641 = vmatprep.subr.bf16.mxu0 0
        %642 = vmatpush2.bf16.xpose.msra.mxu0 0
        %643 = vmatprep.subr.bf16.mxu0 0
        %644 = vmatpush2.bf16.xpose.msra.mxu0 0
        %645 = vmatprep.subr.bf16.mxu0 0
        %646 = vmatpush2.bf16.xpose.msra.mxu0 0
        %647 = vmatprep.mubr.bf16.mxu0 0
        %648 = vmatmul.mubr.bf16.gmra.mxu0 %v610
        %v649 = vpop.f32.mrf.mxu0
        %v650 = vadd.f32 0.0, %v649
        %v651 = vpop.f32.mrf.mxu0
        %v652 = vpop.f32.mrf.mxu0
        %v653 = vpop.f32.mrf.mxu0
        %654 = vdwg.mxu0
        %655 = vrot.lane.b32.xlu0 %v555, 96
        %v656 = vpop.permute.xlu0 %655
        %v658 = vsel %vm560, %v555, 0
        %v661 = vsel %vm560, %v656, 0
        %663 = vmatprep.subr.bf16.mxu0 0
        %664 = vmatpush1.bf16.xpose.msra.mxu0 0
        %665 = vmatprep.subr.bf16.mxu0 0
        %666 = vmatpush1.bf16.xpose.msra.mxu0 0
        %667 = vmatprep.subr.bf16.mxu0 0
        %668 = vmatpush1.bf16.xpose.msra.mxu0 0
        %669 = vmatprep.subr.bf16.mxu0 0
        %670 = vmatpush1.bf16.xpose.msra.mxu0 0
        %671 = vmatprep.subr.bf16.mxu0 0
        %672 = vmatpush1.bf16.xpose.msra.mxu0 0
        %673 = vmatprep.subr.bf16.mxu0 0
        %674 = vmatpush1.bf16.xpose.msra.mxu0 0
        %675 = vmatprep.subr.bf16.mxu0 0
        %676 = vmatpush1.bf16.xpose.msra.mxu0 0
        %677 = vmatprep.subr.bf16.mxu0 0
        %678 = vmatpush1.bf16.xpose.msra.mxu0 %v661
        %679 = vmatprep.subr.bf16.mxu0 0
        %680 = vmatpush2.bf16.xpose.msra.mxu0 0
        %681 = vmatprep.subr.bf16.mxu0 0
        %682 = vmatpush2.bf16.xpose.msra.mxu0 0
        %683 = vmatprep.subr.bf16.mxu0 0
        %684 = vmatpush2.bf16.xpose.msra.mxu0 0
        %685 = vmatprep.subr.bf16.mxu0 0
        %686 = vmatpush2.bf16.xpose.msra.mxu0 0
        %687 = vmatprep.subr.bf16.mxu0 0
        %688 = vmatpush2.bf16.xpose.msra.mxu0 0
        %689 = vmatprep.subr.bf16.mxu0 0
        %690 = vmatpush2.bf16.xpose.msra.mxu0 0
        %691 = vmatprep.subr.bf16.mxu0 0
        %692 = vmatpush2.bf16.xpose.msra.mxu0 0
        %693 = vmatprep.subr.bf16.mxu0 0
        %694 = vmatpush2.bf16.xpose.msra.mxu0 0
        %695 = vmatprep.mubr.bf16.mxu0 0
        %696 = vmatmul.mubr.bf16.gmra.mxu0 %v658
        %v697 = vpop.f32.mrf.mxu0
        %v698 = vadd.f32 0.0, %v697
        %v699 = vpop.f32.mrf.mxu0
        %v700 = vpop.f32.mrf.mxu0
        %v701 = vpop.f32.mrf.mxu0
        %702 = vdwg.mxu0
        %703 = vrot.lane.b32.xlu0 %v557, 96
        %v704 = vpop.permute.xlu0 %703
        %v706 = vsel %vm560, %v557, 0
        %v709 = vsel %vm560, %v704, 0
        %711 = vmatprep.subr.bf16.mxu0 0
        %712 = vmatpush1.bf16.xpose.msra.mxu0 0
        %713 = vmatprep.subr.bf16.mxu0 0
        %714 = vmatpush1.bf16.xpose.msra.mxu0 0
        %715 = vmatprep.subr.bf16.mxu0 0
        %716 = vmatpush1.bf16.xpose.msra.mxu0 0
        %717 = vmatprep.subr.bf16.mxu0 0
        %718 = vmatpush1.bf16.xpose.msra.mxu0 0
        %719 = vmatprep.subr.bf16.mxu0 0
        %720 = vmatpush1.bf16.xpose.msra.mxu0 0
        %721 = vmatprep.subr.bf16.mxu0 0
        %722 = vmatpush1.bf16.xpose.msra.mxu0 0
        %723 = vmatprep.subr.bf16.mxu0 0
        %724 = vmatpush1.bf16.xpose.msra.mxu0 0
        %725 = vmatprep.subr.bf16.mxu0 0
        %726 = vmatpush1.bf16.xpose.msra.mxu0 %v709
        %727 = vmatprep.subr.bf16.mxu0 0
        %728 = vmatpush2.bf16.xpose.msra.mxu0 0
        %729 = vmatprep.subr.bf16.mxu0 0
        %730 = vmatpush2.bf16.xpose.msra.mxu0 0
        %731 = vmatprep.subr.bf16.mxu0 0
        %732 = vmatpush2.bf16.xpose.msra.mxu0 0
        %733 = vmatprep.subr.bf16.mxu0 0
        %734 = vmatpush2.bf16.xpose.msra.mxu0 0
        %735 = vmatprep.subr.bf16.mxu0 0
        %736 = vmatpush2.bf16.xpose.msra.mxu0 0
        %737 = vmatprep.subr.bf16.mxu0 0
        %738 = vmatpush2.bf16.xpose.msra.mxu0 0
        %739 = vmatprep.subr.bf16.mxu0 0
        %740 = vmatpush2.bf16.xpose.msra.mxu0 0
        %741 = vmatprep.subr.bf16.mxu0 0
        %742 = vmatpush2.bf16.xpose.msra.mxu0 0
        %743 = vmatprep.mubr.bf16.mxu0 0
        %744 = vmatmul.mubr.bf16.gmra.mxu0 %v706
        %v745 = vpop.f32.mrf.mxu0
        %v746 = vadd.f32 0.0, %v745
        %v747 = vpop.f32.mrf.mxu0
        %v748 = vpop.f32.mrf.mxu0
        %v749 = vpop.f32.mrf.mxu0
        %750 = vdwg.mxu0
        %v751 = vld [vmem:[%s479] sm:$0xf]
        %v752 = vunpack.c.l.bf16 %v751
        %v753 = vadd.f32 %v602, %v752
        %v754 = vadd.f32 %v650, %v752
        %v755 = vadd.f32 %v698, %v752
        %v756 = vadd.f32 %v746, %v752
        %v757 = vsel %vm560, %v753, -inf
        %758 = vmax.xlane.f32.xlu0 %v757
        %v759 = vpop.xlane.xlu0 %758
        %v760 = vsel %vm560, %v754, -inf
        %761 = vmax.xlane.f32.xlu0 %v760
        %v762 = vpop.xlane.xlu0 %761
        %v763 = vsel %vm560, %v755, -inf
        %764 = vmax.xlane.f32.xlu0 %v763
        %v765 = vpop.xlane.xlu0 %764
        %v766 = vsel %vm560, %v756, -inf
        %767 = vmax.xlane.f32.xlu0 %v766
        %v768 = vpop.xlane.xlu0 %767
        %v769 = vsub.f32 %v753, %v759
        %v770 = vsub.f32 %v754, %v762
        %v771 = vsub.f32 %v755, %v765
        %v772 = vsub.f32 %v756, %v768
        %v773 = vmul.f32 %v769, 1.442695
        %v774 = vpow.pop %v773
        %v775 = vmul.f32 %v770, 1.442695
        %v776 = vpow.pop %v775
        %v777 = vmul.f32 %v771, 1.442695
        %v778 = vpow.pop %v777
        %v779 = vmul.f32 %v772, 1.442695
        %v780 = vpow.pop %v779
        %v781 = vsel %vm560, %v774, 0.0
        %782 = vadd.xlane.f32.xlu0 %v781
        %v783 = vpop.xlane.xlu0 %782
        %v784 = vsel %vm560, %v776, 0.0
        %785 = vadd.xlane.f32.xlu0 %v784
        %v786 = vpop.xlane.xlu0 %785
        %v787 = vsel %vm560, %v778, 0.0
        %788 = vadd.xlane.f32.xlu0 %v787
        %v789 = vpop.xlane.xlu0 %788
        %v790 = vsel %vm560, %v780, 0.0
        %791 = vadd.xlane.f32.xlu0 %v790
        %v792 = vpop.xlane.xlu0 %791
        %v793 = vrcp.pop %v783
        %v794 = vrcp.pop %v786
        %v795 = vrcp.pop %v789
        %v796 = vrcp.pop %v792
        %v797 = vmul.f32 %v774, %v793
        %v798 = vmul.f32 %v776, %v794
        %v799 = vmul.f32 %v778, %v795
        %v800 = vmul.f32 %v780, %v796
        %v801 = vpack.c.bf16 %v797, %v797
        %v802 = vpack.c.bf16 %v798, %v798
        %v803 = vpack.c.bf16 %v799, %v799
        %v804 = vpack.c.bf16 %v800, %v800
        %805 = vrot.lane.b32.xlu0 %v550, 64
        %v806 = vpop.permute.xlu0 %805
        %v808 = vsel %vm560, %v801, 0
        %vm810 = vcmask 1043456
        %v812 = vsel %vm810, %v806, 0
        %814 = vmatprep.subr.bf16.mxu0 0
        %815 = vmatpush1.bf16.msra.mxu0 0
        %816 = vmatprep.subr.bf16.mxu0 0
        %817 = vmatpush1.bf16.msra.mxu0 0
        %818 = vmatprep.subr.bf16.mxu0 0
        %819 = vmatpush1.bf16.msra.mxu0 0
        %820 = vmatprep.subr.bf16.mxu0 0
        %821 = vmatpush1.bf16.msra.mxu0 0
        %822 = vmatprep.subr.bf16.mxu0 0
        %823 = vmatpush1.bf16.msra.mxu0 0
        %824 = vmatprep.subr.bf16.mxu0 0
        %825 = vmatpush1.bf16.msra.mxu0 0
        %826 = vmatprep.subr.bf16.mxu0 0
        %827 = vmatpush1.bf16.msra.mxu0 0
        %828 = vmatprep.subr.bf16.mxu0 0
        %829 = vmatpush1.bf16.msra.mxu0 %v812
        %830 = vmatprep.subr.bf16.mxu0 0
        %831 = vmatpush2.bf16.msra.mxu0 0
        %832 = vmatprep.subr.bf16.mxu0 0
        %833 = vmatpush2.bf16.msra.mxu0 0
        %834 = vmatprep.subr.bf16.mxu0 0
        %835 = vmatpush2.bf16.msra.mxu0 0
        %836 = vmatprep.subr.bf16.mxu0 0
        %837 = vmatpush2.bf16.msra.mxu0 0
        %838 = vmatprep.subr.bf16.mxu0 0
        %839 = vmatpush2.bf16.msra.mxu0 0
        %840 = vmatprep.subr.bf16.mxu0 0
        %841 = vmatpush2.bf16.msra.mxu0 0
        %842 = vmatprep.subr.bf16.mxu0 0
        %843 = vmatpush2.bf16.msra.mxu0 0
        %844 = vmatprep.subr.bf16.mxu0 0
        %845 = vmatpush2.bf16.msra.mxu0 0
        %846 = vmatprep.mubr.bf16.mxu0 0
        %847 = vmatmul.mubr.bf16.gmra.mxu0 %v808
        %v848 = vpop.f32.mrf.mxu0
        %v849 = vadd.f32 0.0, %v848
        %v850 = vpop.f32.mrf.mxu0
        %v851 = vpop.f32.mrf.mxu0
        %v852 = vpop.f32.mrf.mxu0
        %853 = vdwg.mxu0
        %854 = vrot.lane.b32.xlu0 %v553, 64
        %v855 = vpop.permute.xlu0 %854
        %v857 = vsel %vm560, %v802, 0
        %v860 = vsel %vm810, %v855, 0
        %862 = vmatprep.subr.bf16.mxu0 0
        %863 = vmatpush1.bf16.msra.mxu0 0
        %864 = vmatprep.subr.bf16.mxu0 0
        %865 = vmatpush1.bf16.msra.mxu0 0
        %866 = vmatprep.subr.bf16.mxu0 0
        %867 = vmatpush1.bf16.msra.mxu0 0
        %868 = vmatprep.subr.bf16.mxu0 0
        %869 = vmatpush1.bf16.msra.mxu0 0
        %870 = vmatprep.subr.bf16.mxu0 0
        %871 = vmatpush1.bf16.msra.mxu0 0
        %872 = vmatprep.subr.bf16.mxu0 0
        %873 = vmatpush1.bf16.msra.mxu0 0
        %874 = vmatprep.subr.bf16.mxu0 0
        %875 = vmatpush1.bf16.msra.mxu0 0
        %876 = vmatprep.subr.bf16.mxu0 0
        %877 = vmatpush1.bf16.msra.mxu0 %v860
        %878 = vmatprep.subr.bf16.mxu0 0
        %879 = vmatpush2.bf16.msra.mxu0 0
        %880 = vmatprep.subr.bf16.mxu0 0
        %881 = vmatpush2.bf16.msra.mxu0 0
        %882 = vmatprep.subr.bf16.mxu0 0
        %883 = vmatpush2.bf16.msra.mxu0 0
        %884 = vmatprep.subr.bf16.mxu0 0
        %885 = vmatpush2.bf16.msra.mxu0 0
        %886 = vmatprep.subr.bf16.mxu0 0
        %887 = vmatpush2.bf16.msra.mxu0 0
        %888 = vmatprep.subr.bf16.mxu0 0
        %889 = vmatpush2.bf16.msra.mxu0 0
        %890 = vmatprep.subr.bf16.mxu0 0
        %891 = vmatpush2.bf16.msra.mxu0 0
        %892 = vmatprep.subr.bf16.mxu0 0
        %893 = vmatpush2.bf16.msra.mxu0 0
        %894 = vmatprep.mubr.bf16.mxu0 0
        %895 = vmatmul.mubr.bf16.gmra.mxu0 %v857
        %v896 = vpop.f32.mrf.mxu0
        %v897 = vadd.f32 0.0, %v896
        %v898 = vpop.f32.mrf.mxu0
        %v899 = vpop.f32.mrf.mxu0
        %v900 = vpop.f32.mrf.mxu0
        %901 = vdwg.mxu0
        %902 = vrot.lane.b32.xlu0 %v555, 64
        %v903 = vpop.permute.xlu0 %902
        %v905 = vsel %vm560, %v803, 0
        %v908 = vsel %vm810, %v903, 0
        %910 = vmatprep.subr.bf16.mxu0 0
        %911 = vmatpush1.bf16.msra.mxu0 0
        %912 = vmatprep.subr.bf16.mxu0 0
        %913 = vmatpush1.bf16.msra.mxu0 0
        %914 = vmatprep.subr.bf16.mxu0 0
        %915 = vmatpush1.bf16.msra.mxu0 0
        %916 = vmatprep.subr.bf16.mxu0 0
        %917 = vmatpush1.bf16.msra.mxu0 0
        %918 = vmatprep.subr.bf16.mxu0 0
        %919 = vmatpush1.bf16.msra.mxu0 0
        %920 = vmatprep.subr.bf16.mxu0 0
        %921 = vmatpush1.bf16.msra.mxu0 0
        %922 = vmatprep.subr.bf16.mxu0 0
        %923 = vmatpush1.bf16.msra.mxu0 0
        %924 = vmatprep.subr.bf16.mxu0 0
        %925 = vmatpush1.bf16.msra.mxu0 %v908
        %926 = vmatprep.subr.bf16.mxu0 0
        %927 = vmatpush2.bf16.msra.mxu0 0
        %928 = vmatprep.subr.bf16.mxu0 0
        %929 = vmatpush2.bf16.msra.mxu0 0
        %930 = vmatprep.subr.bf16.mxu0 0
        %931 = vmatpush2.bf16.msra.mxu0 0
        %932 = vmatprep.subr.bf16.mxu0 0
        %933 = vmatpush2.bf16.msra.mxu0 0
        %934 = vmatprep.subr.bf16.mxu0 0
        %935 = vmatpush2.bf16.msra.mxu0 0
        %936 = vmatprep.subr.bf16.mxu0 0
        %937 = vmatpush2.bf16.msra.mxu0 0
        %938 = vmatprep.subr.bf16.mxu0 0
        %939 = vmatpush2.bf16.msra.mxu0 0
        %940 = vmatprep.subr.bf16.mxu0 0
        %941 = vmatpush2.bf16.msra.mxu0 0
        %942 = vmatprep.mubr.bf16.mxu0 0
        %943 = vmatmul.mubr.bf16.gmra.mxu0 %v905
        %v944 = vpop.f32.mrf.mxu0
        %v945 = vadd.f32 0.0, %v944
        %v946 = vpop.f32.mrf.mxu0
        %v947 = vpop.f32.mrf.mxu0
        %v948 = vpop.f32.mrf.mxu0
        %949 = vdwg.mxu0
        %950 = vrot.lane.b32.xlu0 %v557, 64
        %v951 = vpop.permute.xlu0 %950
        %v953 = vsel %vm560, %v804, 0
        %v956 = vsel %vm810, %v951, 0
        %958 = vmatprep.subr.bf16.mxu0 0
        %959 = vmatpush1.bf16.msra.mxu0 0
        %960 = vmatprep.subr.bf16.mxu0 0
        %961 = vmatpush1.bf16.msra.mxu0 0
        %962 = vmatprep.subr.bf16.mxu0 0
        %963 = vmatpush1.bf16.msra.mxu0 0
        %964 = vmatprep.subr.bf16.mxu0 0
        %965 = vmatpush1.bf16.msra.mxu0 0
        %966 = vmatprep.subr.bf16.mxu0 0
        %967 = vmatpush1.bf16.msra.mxu0 0
        %968 = vmatprep.subr.bf16.mxu0 0
        %969 = vmatpush1.bf16.msra.mxu0 0
        %970 = vmatprep.subr.bf16.mxu0 0
        %971 = vmatpush1.bf16.msra.mxu0 0
        %972 = vmatprep.subr.bf16.mxu0 0
        %973 = vmatpush1.bf16.msra.mxu0 %v956
        %974 = vmatprep.subr.bf16.mxu0 0
        %975 = vmatpush2.bf16.msra.mxu0 0
        %976 = vmatprep.subr.bf16.mxu0 0
        %977 = vmatpush2.bf16.msra.mxu0 0
        %978 = vmatprep.subr.bf16.mxu0 0
        %979 = vmatpush2.bf16.msra.mxu0 0
        %980 = vmatprep.subr.bf16.mxu0 0
        %981 = vmatpush2.bf16.msra.mxu0 0
        %982 = vmatprep.subr.bf16.mxu0 0
        %983 = vmatpush2.bf16.msra.mxu0 0
        %984 = vmatprep.subr.bf16.mxu0 0
        %985 = vmatpush2.bf16.msra.mxu0 0
        %986 = vmatprep.subr.bf16.mxu0 0
        %987 = vmatpush2.bf16.msra.mxu0 0
        %988 = vmatprep.subr.bf16.mxu0 0
        %989 = vmatpush2.bf16.msra.mxu0 0
        %990 = vmatprep.mubr.bf16.mxu0 0
        %991 = vmatmul.mubr.bf16.gmra.mxu0 %v953
        %v992 = vpop.f32.mrf.mxu0
        %v993 = vadd.f32 0.0, %v992
        %v994 = vpop.f32.mrf.mxu0
        %v995 = vpop.f32.mrf.mxu0
        %v996 = vpop.f32.mrf.mxu0
        %997 = vdwg.mxu0
        %v998 = vpack.c.bf16 %v849, %v849
        %v999 = vpack.c.bf16 %v897, %v897
        %v1000 = vpack.c.bf16 %v945, %v945
        %v1001 = vpack.c.bf16 %v993, %v993
        %1003 = vrot.lane.b32.xlu0 %v999, 8
        %v1004 = vpop.permute.xlu0 %1003
        %1006 = vrot.lane.b32.xlu0 %v1000, 16
        %v1007 = vpop.permute.xlu0 %1006
        %1009 = vrot.lane.b32.xlu0 %v1001, 24
        %v1010 = vpop.permute.xlu0 %1009
        %v1013 = vsel %vm560, %v998, %v1004
        %vm1014 = vcmask 130048
        %v1016 = vsel %vm1014, %v1013, %v1007
        %vm1017 = vcmask 195584
        %v1019 = vsel %vm1017, %v1016, %v1010
        %v1020 = vld [vmem:[%s4] sm:$0xf]
        %v1021 = vld [vmem:[%s4 + $0x4] sm:$0xf]
        %v1022 = vld [vmem:[%s4 + $0x8] sm:$0xf]
        %v1023 = vld [vmem:[%s4 + $0xc] sm:$0xf]
        %v1024 = vld [vmem:[%s5] sm:$0x1]
        %v1026 = vlaneseq
        %v1027 = vshrl.u32 %v1026, 7
        %v1028 = vsub.s32 0, %v1027
        %v1029 = vrot.slane %v1024, %v1028
        %v1035 = vunpack.c.l.b16 %v1020
        %v1036 = vunpack.c.l.b16 %v1021
        %v1037 = vunpack.c.l.b16 %v1022
        %v1038 = vunpack.c.l.b16 %v1023
        %v1039 = vpack.c.b16 %v1036, %v1035
        %v1040 = vpack.c.b16 %v1038, %v1037
        %v1043 = vsel %vm506, %v1019, 0
        %1045 = vmatprep.subr.bf16.mxu0 0
        %1046 = vmatpush1.bf16.msra.mxu0 0
        %1047 = vmatprep.subr.bf16.mxu0 0
        %1048 = vmatpush1.bf16.msra.mxu0 0
        %1049 = vmatprep.subr.bf16.mxu0 0
        %1050 = vmatpush1.bf16.msra.mxu0 0
        %1051 = vmatprep.subr.bf16.mxu0 0
        %1052 = vmatpush1.bf16.msra.mxu0 0
        %1053 = vmatprep.subr.bf16.mxu0 0
        %1054 = vmatpush1.bf16.msra.mxu0 0
        %1055 = vmatprep.subr.bf16.mxu0 0
        %1056 = vmatpush1.bf16.msra.mxu0 0
        %1057 = vmatprep.subr.bf16.mxu0 0
        %1058 = vmatpush1.bf16.msra.mxu0 %v1040
        %1059 = vmatprep.subr.bf16.mxu0 0
        %1060 = vmatpush1.bf16.msra.mxu0 %v1039
        %1061 = vmatprep.subr.bf16.mxu0 0
        %1062 = vmatpush2.bf16.msra.mxu0 0
        %1063 = vmatprep.subr.bf16.mxu0 0
        %1064 = vmatpush2.bf16.msra.mxu0 0
        %1065 = vmatprep.subr.bf16.mxu0 0
        %1066 = vmatpush2.bf16.msra.mxu0 0
        %1067 = vmatprep.subr.bf16.mxu0 0
        %1068 = vmatpush2.bf16.msra.mxu0 0
        %1069 = vmatprep.subr.bf16.mxu0 0
        %1070 = vmatpush2.bf16.msra.mxu0 0
        %1071 = vmatprep.subr.bf16.mxu0 0
        %1072 = vmatpush2.bf16.msra.mxu0 0
        %1073 = vmatprep.subr.bf16.mxu0 0
        %1074 = vmatpush2.bf16.msra.mxu0 0
        %1075 = vmatprep.subr.bf16.mxu0 0
        %1076 = vmatpush2.bf16.msra.mxu0 0
        %1077 = vmatprep.mubr.bf16.mxu0 0
        %1078 = vmatmul.mubr.bf16.gmra.mxu0 %v1043
        %v1079 = vpop.f32.mrf.mxu0
        %v1080 = vadd.f32 %v1029, %v1079
        %v1081 = vpop.f32.mrf.mxu0
        %v1082 = vpop.f32.mrf.mxu0
        %v1083 = vpop.f32.mrf.mxu0
        %1084 = vdwg.mxu0
        %v1085 = vadd.f32 %v481, %v1080
        %v1086 = vld [vmem:[%s6] sm:$0x1]
        %v1087 = vld [vmem:[%s7] sm:$0x1]
        %v1088 = vsel %vm506, %v1085, 0.0
        %1089 = vadd.xlane.f32.xlu0 %v1088
        %v1090 = vpop.xlane.xlu0 %1089
        %v1091 = vmul.f32 %v1090, 0.03125
        %v1092 = vsub.f32 %v1085, %v1091
        %v1093 = vmul.f32 %v1092, %v1092
        %v1094 = vsel %vm506, %v1093, 0.0
        %1095 = vadd.xlane.f32.xlu0 %v1094
        %v1096 = vpop.xlane.xlu0 %1095
        %v1097 = vmul.f32 %v1096, 0.032258064
        %v1098 = vrsqrt.pop %v1097
        %v1099 = vmul.f32 %v1097, %v1098
        %vm1100 = vcmp.eq.f32.partialorder %v1097, inf
        %v1101 = vsel %vm1100, %v1097, %v1099
        %vm1102 = vcmp.eq.f32.partialorder %v1097, 0.0
        %v1103 = vand.u32 %v1097, 2147483648
        %v1104 = vsel %vm1102, %v1103, %v1101
        %v1106 = vlaneseq
        %v1107 = vshrl.u32 %v1106, 7
        %v1108 = vsub.s32 0, %v1107
        %v1109 = vrot.slane %v1086, %v1108
        %v1111 = vmul.f32 %v1109, %v1092
        %v1112 = vadd.f32 %v1104, 1e-06
        %v1113 = vrcp.pop %v1112
        %v1114 = vmul.f32 %v1111, %v1113
        %v1116 = vlaneseq
        %v1117 = vshrl.u32 %v1116, 7
        %v1118 = vsub.s32 0, %v1117
        %v1119 = vrot.slane %v1087, %v1118
        %v1121 = vadd.f32 %v1114, %v1119
        %v1122 = vpack.c.bf16 %v1121, %v1121
        %v1123 = vld [vmem:[%s8] sm:$0xf]
        %v1124 = vld [vmem:[%s8 + $0x4] sm:$0xf]
        %v1125 = vld [vmem:[%s8 + $0x8] sm:$0xf]
        %v1126 = vld [vmem:[%s8 + $0xc] sm:$0xf]
        %v1127 = vld [vmem:[%s9] sm:$0x1]
        %v1129 = vlaneseq
        %v1130 = vshrl.u32 %v1129, 7
        %v1131 = vsub.s32 0, %v1130
        %v1132 = vrot.slane %v1127, %v1131
        %v1138 = vunpack.c.l.b16 %v1123
        %v1139 = vunpack.c.l.b16 %v1124
        %v1140 = vunpack.c.l.b16 %v1125
        %v1141 = vunpack.c.l.b16 %v1126
        %v1142 = vpack.c.b16 %v1139, %v1138
        %v1143 = vpack.c.b16 %v1141, %v1140
        %v1147 = vsel %vm506, %v1122, 0
        %1149 = vmatprep.subr.bf16.mxu0 0
        %1150 = vmatpush1.bf16.msra.mxu0 0
        %1151 = vmatprep.subr.bf16.mxu0 0
        %1152 = vmatpush1.bf16.msra.mxu0 0
        %1153 = vmatprep.subr.bf16.mxu0 0
        %1154 = vmatpush1.bf16.msra.mxu0 0
        %1155 = vmatprep.subr.bf16.mxu0 0
        %1156 = vmatpush1.bf16.msra.mxu0 0
        %1157 = vmatprep.subr.bf16.mxu0 0
        %1158 = vmatpush1.bf16.msra.mxu0 0
        %1159 = vmatprep.subr.bf16.mxu0 0
        %1160 = vmatpush1.bf16.msra.mxu0 0
        %1161 = vmatprep.subr.bf16.mxu0 0
        %1162 = vmatpush1.bf16.msra.mxu0 %v1143
        %1163 = vmatprep.subr.bf16.mxu0 0
        %1164 = vmatpush1.bf16.msra.mxu0 %v1142
        %1165 = vmatprep.subr.bf16.mxu0 0
        %1166 = vmatpush2.bf16.msra.mxu0 0
        %1167 = vmatprep.subr.bf16.mxu0 0
        %1168 = vmatpush2.bf16.msra.mxu0 0
        %1169 = vmatprep.subr.bf16.mxu0 0
        %1170 = vmatpush2.bf16.msra.mxu0 0
        %1171 = vmatprep.subr.bf16.mxu0 0
        %1172 = vmatpush2.bf16.msra.mxu0 0
        %1173 = vmatprep.subr.bf16.mxu0 0
        %1174 = vmatpush2.bf16.msra.mxu0 0
        %1175 = vmatprep.subr.bf16.mxu0 0
        %1176 = vmatpush2.bf16.msra.mxu0 0
        %1177 = vmatprep.subr.bf16.mxu0 0
        %1178 = vmatpush2.bf16.msra.mxu0 0
        %1179 = vmatprep.subr.bf16.mxu0 0
        %1180 = vmatpush2.bf16.msra.mxu0 0
        %1181 = vmatprep.mubr.bf16.mxu0 0
        %1182 = vmatmul.mubr.bf16.gmra.mxu0 %v1147
        %v1183 = vpop.f32.mrf.mxu0
        %v1184 = vadd.f32 %v1132, %v1183
        %v1185 = vpop.f32.mrf.mxu0
        %v1186 = vpop.f32.mrf.mxu0
        %v1187 = vpop.f32.mrf.mxu0
        %1188 = vdwg.mxu0
        %v1189 = vmul.f32 %v1184, 0.5
        %v1190 = vmul.f32 %v1184, 0.044715
        %v1191 = vmul.f32 %v1190, %v1184
        %v1192 = vmul.f32 %v1191, %v1184
        %v1193 = vadd.f32 %v1184, %v1192
        %v1194 = vmul.f32 %v1193, 0.7978846
        %v1195 = vtanh.pop %v1194
        %v1196 = vadd.f32 %v1195, 1.0
        %v1197 = vmul.f32 %v1189, %v1196
        %v1198 = vpack.c.bf16 %v1197, %v1197
        %v1199 = vld [vmem:[%s10] sm:$0xf]
        %v1200 = vld [vmem:[%s10 + $0x4] sm:$0xf]
        %v1201 = vld [vmem:[%s10 + $0x8] sm:$0xf]
        %v1202 = vld [vmem:[%s10 + $0xc] sm:$0xf]
        %v1203 = vld [vmem:[%s10 + $0x10] sm:$0xf]
        %v1204 = vld [vmem:[%s10 + $0x14] sm:$0xf]
        %v1205 = vld [vmem:[%s10 + $0x18] sm:$0xf]
        %v1206 = vld [vmem:[%s10 + $0x1c] sm:$0xf]
        %v1207 = vld [vmem:[%s11] sm:$0x1]
        %v1209 = vlaneseq
        %v1210 = vshrl.u32 %v1209, 7
        %v1211 = vsub.s32 0, %v1210
        %v1212 = vrot.slane %v1207, %v1211
        %v1222 = vunpack.c.l.b16 %v1199
        %v1223 = vunpack.c.l.b16 %v1200
        %v1224 = vunpack.c.l.b16 %v1201
        %v1225 = vunpack.c.l.b16 %v1202
        %v1226 = vunpack.c.l.b16 %v1203
        %v1227 = vunpack.c.l.b16 %v1204
        %v1228 = vunpack.c.l.b16 %v1205
        %v1229 = vunpack.c.l.b16 %v1206
        %v1230 = vpack.c.b16 %v1223, %v1222
        %v1231 = vpack.c.b16 %v1225, %v1224
        %v1232 = vpack.c.b16 %v1227, %v1226
        %v1233 = vpack.c.b16 %v1229, %v1228
        %vm1238 = vcmask 523264
        %v1240 = vsel %vm1238, %v1198, 0
        %1242 = vmatprep.subr.bf16.mxu0 0
        %1243 = vmatpush1.bf16.msra.mxu0 0
        %1244 = vmatprep.subr.bf16.mxu0 0
        %1245 = vmatpush1.bf16.msra.mxu0 0
        %1246 = vmatprep.subr.bf16.mxu0 0
        %1247 = vmatpush1.bf16.msra.mxu0 0
        %1248 = vmatprep.subr.bf16.mxu0 0
        %1249 = vmatpush1.bf16.msra.mxu0 0
        %1250 = vmatprep.subr.bf16.mxu0 0
        %1251 = vmatpush1.bf16.msra.mxu0 %v1233
        %1252 = vmatprep.subr.bf16.mxu0 0
        %1253 = vmatpush1.bf16.msra.mxu0 %v1232
        %1254 = vmatprep.subr.bf16.mxu0 0
        %1255 = vmatpush1.bf16.msra.mxu0 %v1231
        %1256 = vmatprep.subr.bf16.mxu0 0
        %1257 = vmatpush1.bf16.msra.mxu0 %v1230
        %1258 = vmatprep.subr.bf16.mxu0 0
        %1259 = vmatpush2.bf16.msra.mxu0 0
        %1260 = vmatprep.subr.bf16.mxu0 0
        %1261 = vmatpush2.bf16.msra.mxu0 0
        %1262 = vmatprep.subr.bf16.mxu0 0
        %1263 = vmatpush2.bf16.msra.mxu0 0
        %1264 = vmatprep.subr.bf16.mxu0 0
        %1265 = vmatpush2.bf16.msra.mxu0 0
        %1266 = vmatprep.subr.bf16.mxu0 0
        %1267 = vmatpush2.bf16.msra.mxu0 0
        %1268 = vmatprep.subr.bf16.mxu0 0
        %1269 = vmatpush2.bf16.msra.mxu0 0
        %1270 = vmatprep.subr.bf16.mxu0 0
        %1271 = vmatpush2.bf16.msra.mxu0 0
        %1272 = vmatprep.subr.bf16.mxu0 0
        %1273 = vmatpush2.bf16.msra.mxu0 0
        %1274 = vmatprep.mubr.bf16.mxu0 0
        %1275 = vmatmul.mubr.bf16.gmra.mxu0 %v1240
        %v1276 = vpop.f32.mrf.mxu0
        %v1277 = vadd.f32 %v1212, %v1276
        %v1278 = vpop.f32.mrf.mxu0
        %v1279 = vpop.f32.mrf.mxu0
        %v1280 = vpop.f32.mrf.mxu0
        %1281 = vdwg.mxu0
        %v1282 = vadd.f32 %v1121, %v1277
        %v1283 = vld [vmem:[%s12] sm:$0x1]
        %v1284 = vld [vmem:[%s13] sm:$0x1]
        %v1285 = vsel %vm506, %v1282, 0.0
        %1286 = vadd.xlane.f32.xlu0 %v1285
        %v1287 = vpop.xlane.xlu0 %1286
        %v1288 = vmul.f32 %v1287, 0.03125
        %v1289 = vsub.f32 %v1282, %v1288
        %v1290 = vmul.f32 %v1289, %v1289
        %v1291 = vsel %vm506, %v1290, 0.0
        %1292 = vadd.xlane.f32.xlu0 %v1291
        %v1293 = vpop.xlane.xlu0 %1292
        %v1294 = vmul.f32 %v1293, 0.032258064
        %v1295 = vrsqrt.pop %v1294
        %v1296 = vmul.f32 %v1294, %v1295
        %vm1297 = vcmp.eq.f32.partialorder %v1294, inf
        %v1298 = vsel %vm1297, %v1294, %v1296
        %vm1299 = vcmp.eq.f32.partialorder %v1294, 0.0
        %v1300 = vand.u32 %v1294, 2147483648
        %v1301 = vsel %vm1299, %v1300, %v1298
        %v1303 = vlaneseq
        %v1304 = vshrl.u32 %v1303, 7
        %v1305 = vsub.s32 0, %v1304
        %v1306 = vrot.slane %v1283, %v1305
        %v1308 = vmul.f32 %v1306, %v1289
        %v1309 = vadd.f32 %v1301, 1e-06
        %v1310 = vrcp.pop %v1309
        %v1311 = vmul.f32 %v1308, %v1310
        %v1313 = vlaneseq
        %v1314 = vshrl.u32 %v1313, 7
        %v1315 = vsub.s32 0, %v1314
        %v1316 = vrot.slane %v1284, %v1315
        %v1318 = vadd.f32 %v1311, %v1316
        %1319 = vst.msk [vmem:[%s471] sm:$0xff] %vm506, %v1318
        %s1320 = sand.u32 %s340, 1
        %s1321 = scalar_lea.sflag [#allocation3], %s1320
        %s1322 = sand.u32 %s340, 1
        %s1323 = smul.addr %s1322, 8
        %s1324 = scalar_lea.vmem [#allocation2], %s1323
        // Predicated region
        $region77: #{_transformer_block_impl.1} parent=75 // pred_check
          %p1325 = pneg %p350
        $region78: #{_transformer_block_impl.1} parent=75 // pred_check_branch
          %1327 = sbr.rel (%p1325) target = $region80
        $region79: #{_transformer_block_impl.1} parent=75 // pred_region
          %s1329 = ssub.s32 128, 128
          %1330 = vsyncadd %s1321, %s1329
          %s1331 = smul.addr %s28, 128
          %s1332 = scalar_lea.hbm %s14, %s1331
          %s1334 = sshll.u32 %s1324, 4
          %s1335 = int_to_ptr.vmem [resolvable:$true] %s1334
          %1337 = dma.vmem_to_hbm [thread:$0]  %s1335, 128, %s1332, %s1321
        $region80: #{_transformer_block_impl.1} parent=75 // pred_fallthru
          _
      $region76: #{_transformer_block_impl.1} parent=5 // pred_fallthru
        _
      %p1338 = scmp.le.s32.totalorder 2, %s23
      // Predicated region
      $region81: #{_transformer_block_impl.1} parent=5 // pred_check
        %p1339 = pneg %p1338
      $region82: #{_transformer_block_impl.1} parent=5 // pred_check_branch
        %1341 = sbr.rel (%p1339) target = $region84
      $region83: #{_transformer_block_impl.1} parent=5 // pred_region
        %s1342 = ssub.s32 %s23, 2
        // Predicated region
        $region85: #{_transformer_block_impl.1} parent=83 // pred_check
          %p1343 = pneg %p356
        $region86: #{_transformer_block_impl.1} parent=83 // pred_check_branch
          %1345 = sbr.rel (%p1343) target = $region88
        $region87: #{_transformer_block_impl.1} parent=83 // pred_region
          %s1346 = sand.u32 %s341, 1
          %s1347 = scalar_lea.sflag [#allocation3], %s1346
          %s1348 = sand.u32 %s341, 1
          %s1349 = smul.addr %s1348, 8
          %s1350 = scalar_lea.vmem [#allocation2], %s1349
          %1351 = dma.done %s1347, 128
        $region88: #{_transformer_block_impl.1} parent=83 // pred_fallthru
          _
      $region84: #{_transformer_block_impl.1} parent=5 // pred_fallthru
        _
    $region6: #{_transformer_block_impl.1} parent=1 // loop_footer
      %s27 = sadd.s32 1, %s23
    $region7: #{_transformer_block_impl.1} parent=1 // loop_footer_branch
      %22 = sbr.rel target = $region3
    $region8: #{_transformer_block_impl.1} parent=1 // loop_exit
      _
    %1352 = vsyncpa [#allocation3], 1
    %s1353 = scalar_lea.sflag [#allocation3], 1
    %1354 = vsyncpa %s1353, 1

</llo_original>
